<compile_context>
chip_gen: v7x
topology: tpu7x:2x2x1
jax: 0.10.0
libtpu: 0.0.40
codegen_flags: <defaults>
</compile_context>

<pallas_src>
import functools

import jax
import jax.numpy as jnp
from jax.experimental import pallas as pl
from jax.experimental.pallas import tpu as pltpu


def _patcher_kernel(x_ref, o_ref, *, C, P, GW, R):
    """x_ref: (1, C, R*P, W) VMEM tile; o_ref: (1, R, GW*C*P*P) VMEM tile."""
    rows = []
    for r in range(R):                      # patch-rows in this strip
        parts = []
        for gw in range(GW):                # patch-columns
            for c in range(C):              # channels
                patch = x_ref[0, c, r * P:(r + 1) * P, gw * P:(gw + 1) * P]  # (P, P)
                parts.append(patch.reshape(1, P * P))      # (kh, kw) flattened
        # lane order inside row: gw-major, then c, then (kh, kw)
        row = parts[0] if len(parts) == 1 else jnp.concatenate(parts, axis=-1)
        rows.append(row)                                    # (1, GW*C*P*P)
    slab = rows[0] if len(rows) == 1 else jnp.concatenate(rows, axis=0)  # (R, GW*C*P*P)
    # Single lane-dense store for the whole strip.
    o_ref[0, :, :] = slab


def _choose_strip_rows(GH, P, C, W, itemsize, target_bytes=4 << 20):
    """Patch-rows per grid block.

    Must keep Mosaic block rules: the input block's sublane dim (R*P) and the
    output block's sublane dim (R) must each be a multiple of the sublane tile
    or the full extent.  Also bounds per-block VMEM (~ a few MiB).
    """
    sub = 8 * max(1, 4 // max(1, itemsize))      # 8 for f32, 16 for bf16, 32 for int8
    row_bytes = 2 * C * P * W * itemsize         # in + out bytes per patch-row
    if GH < sub or GH * row_bytes <= target_bytes:
        return GH                                # whole image per block (full extent)
    aligned = [r for r in range(sub, GH, sub) if GH % r == 0]
    if not aligned:
        return GH                                # fall back to full extent (correct)
    fitting = [r for r in aligned if r * row_bytes <= target_bytes]
    return max(fitting) if fitting else min(aligned)


def patcher(x, patch_size):
    """Pallas equivalent of Patcher(patch_size).forward(x) for NCHW input."""
    N, C, H, W = x.shape
    P = patch_size
    assert H % P == 0 and W % P == 0, "spatial dims must be divisible by patch_size"
    GH, GW = H // P, W // P
    L = GH * GW
    itemsize = jnp.dtype(x.dtype).itemsize

    R = _choose_strip_rows(GH, P, C, W, itemsize)
    num_strips = GH // R

    block_bytes = 2 * C * (R * P) * W * itemsize            # in + out per block
    vmem_limit = int(min(max(6 * block_bytes, 8 << 20), 32 << 20))

    kernel = functools.partial(_patcher_kernel, C=C, P=P, GW=GW, R=R)
    out_wide = pl.pallas_call(
        kernel,
        # Widened, lane-dense output; identical row-major layout to (N, L, C*P*P).
        out_shape=jax.ShapeDtypeStruct((N, GH, GW * C * P * P), x.dtype),
        grid=(N, num_strips),
        in_specs=[pl.BlockSpec((1, C, R * P, W), lambda n, s: (n, 0, s, 0))],
        out_specs=pl.BlockSpec((1, R, GW * C * P * P), lambda n, s: (n, s, 0)),
        compiler_params=pltpu.CompilerParams(
            dimension_semantics=("parallel", "parallel"),
            vmem_limit_bytes=vmem_limit,
        ),
    )(x)
    # Free reshape back to the nn.Unfold(...).transpose(1, 2) layout.
    return out_wide.reshape(N, L, C * P * P)


def patcher_ref(x, P):
    """Pure-JAX reference (matches torch.nn.Unfold(P, stride=P).transpose(1, 2))."""
    N, C, H, W = x.shape
    GH, GW = H // P, W // P
    x = x.reshape(N, C, GH, P, GW, P)
    x = jnp.transpose(x, (0, 2, 4, 1, 3, 5))        # (N, GH, GW, C, P, P)
    return x.reshape(N, GH * GW, C * P * P)


if __name__ == "__main__":
    N, C, H, W = 2, 4, 16, 16
    P = 4

    key = jax.random.PRNGKey(0)
    x = jax.random.normal(key, (N, C, H, W), dtype=jnp.float32)

    out = patcher(x, P)
    out = jax.block_until_ready(out)

    ref = patcher_ref(x, P)
    assert out.shape == (N, (H // P) * (W // P), C * P * P), out.shape
    assert jnp.allclose(out, ref), "Pallas output mismatch vs reference"

    print("KERNEL_OK")
</pallas_src>

<mosaic_0001>
module attributes {stable_mosaic.version = 11 : i64} {
  func.func @_patcher_kernel(%arg0: i32, %arg1: i32, %arg2: memref<1x4x16x16xf32, #tpu.memory_space<vmem>>, %arg3: memref<1x4x256xf32, #tpu.memory_space<vmem>>) attributes {dimension_semantics = [#tpu.dimension_semantics<parallel>, #tpu.dimension_semantics<parallel>], iteration_bounds = array<i64: 2, 1>, scalar_prefetch = 0 : i64, scratch_operands = 0 : i64, tpu.core_type = #tpu.core_type<tc>, window_params = [{transform_indices = @transform_0, window_bounds = array<i64: 1, 4, 16, 16>}, {transform_indices = @transform_1, window_bounds = array<i64: 1, 4, 256>}]} {
    %c0 = arith.constant 0 : index
    %c0_0 = arith.constant 0 : index
    %c0_1 = arith.constant 0 : index
    %c0_2 = arith.constant 0 : index
    %0 = vector.load %arg2[%c0, %c0_0, %c0_1, %c0_2] : memref<1x4x16x16xf32, #tpu.memory_space<vmem>>, vector<1x1x4x4xf32>
    %1 = vector.shape_cast %0 : vector<1x1x4x4xf32> to vector<4x4xf32>
    %2 = vector.shape_cast %1 : vector<4x4xf32> to vector<1x16xf32>
    %c0_3 = arith.constant 0 : index
    %c1 = arith.constant 1 : index
    %c0_4 = arith.constant 0 : index
    %c0_5 = arith.constant 0 : index
    %3 = vector.load %arg2[%c0_3, %c1, %c0_4, %c0_5] : memref<1x4x16x16xf32, #tpu.memory_space<vmem>>, vector<1x1x4x4xf32>
    %4 = vector.shape_cast %3 : vector<1x1x4x4xf32> to vector<4x4xf32>
    %5 = vector.shape_cast %4 : vector<4x4xf32> to vector<1x16xf32>
    %c0_6 = arith.constant 0 : index
    %c2 = arith.constant 2 : index
    %c0_7 = arith.constant 0 : index
    %c0_8 = arith.constant 0 : index
    %6 = vector.load %arg2[%c0_6, %c2, %c0_7, %c0_8] : memref<1x4x16x16xf32, #tpu.memory_space<vmem>>, vector<1x1x4x4xf32>
    %7 = vector.shape_cast %6 : vector<1x1x4x4xf32> to vector<4x4xf32>
    %8 = vector.shape_cast %7 : vector<4x4xf32> to vector<1x16xf32>
    %c0_9 = arith.constant 0 : index
    %c3 = arith.constant 3 : index
    %c0_10 = arith.constant 0 : index
    %c0_11 = arith.constant 0 : index
    %9 = vector.load %arg2[%c0_9, %c3, %c0_10, %c0_11] : memref<1x4x16x16xf32, #tpu.memory_space<vmem>>, vector<1x1x4x4xf32>
    %10 = vector.shape_cast %9 : vector<1x1x4x4xf32> to vector<4x4xf32>
    %11 = vector.shape_cast %10 : vector<4x4xf32> to vector<1x16xf32>
    %c0_12 = arith.constant 0 : index
    %c0_13 = arith.constant 0 : index
    %c0_14 = arith.constant 0 : index
    %c4 = arith.constant 4 : index
    %12 = vector.load %arg2[%c0_12, %c0_13, %c0_14, %c4] : memref<1x4x16x16xf32, #tpu.memory_space<vmem>>, vector<1x1x4x4xf32>
    %13 = vector.shape_cast %12 : vector<1x1x4x4xf32> to vector<4x4xf32>
    %14 = vector.shape_cast %13 : vector<4x4xf32> to vector<1x16xf32>
    %c0_15 = arith.constant 0 : index
    %c1_16 = arith.constant 1 : index
    %c0_17 = arith.constant 0 : index
    %c4_18 = arith.constant 4 : index
    %15 = vector.load %arg2[%c0_15, %c1_16, %c0_17, %c4_18] : memref<1x4x16x16xf32, #tpu.memory_space<vmem>>, vector<1x1x4x4xf32>
    %16 = vector.shape_cast %15 : vector<1x1x4x4xf32> to vector<4x4xf32>
    %17 = vector.shape_cast %16 : vector<4x4xf32> to vector<1x16xf32>
    %c0_19 = arith.constant 0 : index
    %c2_20 = arith.constant 2 : index
    %c0_21 = arith.constant 0 : index
    %c4_22 = arith.constant 4 : index
    %18 = vector.load %arg2[%c0_19, %c2_20, %c0_21, %c4_22] : memref<1x4x16x16xf32, #tpu.memory_space<vmem>>, vector<1x1x4x4xf32>
    %19 = vector.shape_cast %18 : vector<1x1x4x4xf32> to vector<4x4xf32>
    %20 = vector.shape_cast %19 : vector<4x4xf32> to vector<1x16xf32>
    %c0_23 = arith.constant 0 : index
    %c3_24 = arith.constant 3 : index
    %c0_25 = arith.constant 0 : index
    %c4_26 = arith.constant 4 : index
    %21 = vector.load %arg2[%c0_23, %c3_24, %c0_25, %c4_26] : memref<1x4x16x16xf32, #tpu.memory_space<vmem>>, vector<1x1x4x4xf32>
    %22 = vector.shape_cast %21 : vector<1x1x4x4xf32> to vector<4x4xf32>
    %23 = vector.shape_cast %22 : vector<4x4xf32> to vector<1x16xf32>
    %c0_27 = arith.constant 0 : index
    %c0_28 = arith.constant 0 : index
    %c0_29 = arith.constant 0 : index
    %c8 = arith.constant 8 : index
    %24 = vector.load %arg2[%c0_27, %c0_28, %c0_29, %c8] : memref<1x4x16x16xf32, #tpu.memory_space<vmem>>, vector<1x1x4x4xf32>
    %25 = vector.shape_cast %24 : vector<1x1x4x4xf32> to vector<4x4xf32>
    %26 = vector.shape_cast %25 : vector<4x4xf32> to vector<1x16xf32>
    %c0_30 = arith.constant 0 : index
    %c1_31 = arith.constant 1 : index
    %c0_32 = arith.constant 0 : index
    %c8_33 = arith.constant 8 : index
    %27 = vector.load %arg2[%c0_30, %c1_31, %c0_32, %c8_33] : memref<1x4x16x16xf32, #tpu.memory_space<vmem>>, vector<1x1x4x4xf32>
    %28 = vector.shape_cast %27 : vector<1x1x4x4xf32> to vector<4x4xf32>
    %29 = vector.shape_cast %28 : vector<4x4xf32> to vector<1x16xf32>
    %c0_34 = arith.constant 0 : index
    %c2_35 = arith.constant 2 : index
    %c0_36 = arith.constant 0 : index
    %c8_37 = arith.constant 8 : index
    %30 = vector.load %arg2[%c0_34, %c2_35, %c0_36, %c8_37] : memref<1x4x16x16xf32, #tpu.memory_space<vmem>>, vector<1x1x4x4xf32>
    %31 = vector.shape_cast %30 : vector<1x1x4x4xf32> to vector<4x4xf32>
    %32 = vector.shape_cast %31 : vector<4x4xf32> to vector<1x16xf32>
    %c0_38 = arith.constant 0 : index
    %c3_39 = arith.constant 3 : index
    %c0_40 = arith.constant 0 : index
    %c8_41 = arith.constant 8 : index
    %33 = vector.load %arg2[%c0_38, %c3_39, %c0_40, %c8_41] : memref<1x4x16x16xf32, #tpu.memory_space<vmem>>, vector<1x1x4x4xf32>
    %34 = vector.shape_cast %33 : vector<1x1x4x4xf32> to vector<4x4xf32>
    %35 = vector.shape_cast %34 : vector<4x4xf32> to vector<1x16xf32>
    %c0_42 = arith.constant 0 : index
    %c0_43 = arith.constant 0 : index
    %c0_44 = arith.constant 0 : index
    %c12 = arith.constant 12 : index
    %36 = vector.load %arg2[%c0_42, %c0_43, %c0_44, %c12] : memref<1x4x16x16xf32, #tpu.memory_space<vmem>>, vector<1x1x4x4xf32>
    %37 = vector.shape_cast %36 : vector<1x1x4x4xf32> to vector<4x4xf32>
    %38 = vector.shape_cast %37 : vector<4x4xf32> to vector<1x16xf32>
    %c0_45 = arith.constant 0 : index
    %c1_46 = arith.constant 1 : index
    %c0_47 = arith.constant 0 : index
    %c12_48 = arith.constant 12 : index
    %39 = vector.load %arg2[%c0_45, %c1_46, %c0_47, %c12_48] : memref<1x4x16x16xf32, #tpu.memory_space<vmem>>, vector<1x1x4x4xf32>
    %40 = vector.shape_cast %39 : vector<1x1x4x4xf32> to vector<4x4xf32>
    %41 = vector.shape_cast %40 : vector<4x4xf32> to vector<1x16xf32>
    %c0_49 = arith.constant 0 : index
    %c2_50 = arith.constant 2 : index
    %c0_51 = arith.constant 0 : index
    %c12_52 = arith.constant 12 : index
    %42 = vector.load %arg2[%c0_49, %c2_50, %c0_51, %c12_52] : memref<1x4x16x16xf32, #tpu.memory_space<vmem>>, vector<1x1x4x4xf32>
    %43 = vector.shape_cast %42 : vector<1x1x4x4xf32> to vector<4x4xf32>
    %44 = vector.shape_cast %43 : vector<4x4xf32> to vector<1x16xf32>
    %c0_53 = arith.constant 0 : index
    %c3_54 = arith.constant 3 : index
    %c0_55 = arith.constant 0 : index
    %c12_56 = arith.constant 12 : index
    %45 = vector.load %arg2[%c0_53, %c3_54, %c0_55, %c12_56] : memref<1x4x16x16xf32, #tpu.memory_space<vmem>>, vector<1x1x4x4xf32>
    %46 = vector.shape_cast %45 : vector<1x1x4x4xf32> to vector<4x4xf32>
    %47 = vector.shape_cast %46 : vector<4x4xf32> to vector<1x16xf32>
    %48 = tpu.concatenate %2, %5, %8, %11, %14, %17, %20, %23, %26, %29, %32, %35, %38, %41, %44, %47 in 1 : vector<1x16xf32>, vector<1x16xf32>, vector<1x16xf32>, vector<1x16xf32>, vector<1x16xf32>, vector<1x16xf32>, vector<1x16xf32>, vector<1x16xf32>, vector<1x16xf32>, vector<1x16xf32>, vector<1x16xf32>, vector<1x16xf32>, vector<1x16xf32>, vector<1x16xf32>, vector<1x16xf32>, vector<1x16xf32> -> vector<1x256xf32>
    %c0_57 = arith.constant 0 : index
    %c0_58 = arith.constant 0 : index
    %c4_59 = arith.constant 4 : index
    %c0_60 = arith.constant 0 : index
    %49 = vector.load %arg2[%c0_57, %c0_58, %c4_59, %c0_60] : memref<1x4x16x16xf32, #tpu.memory_space<vmem>>, vector<1x1x4x4xf32>
    %50 = vector.shape_cast %49 : vector<1x1x4x4xf32> to vector<4x4xf32>
    %51 = vector.shape_cast %50 : vector<4x4xf32> to vector<1x16xf32>
    %c0_61 = arith.constant 0 : index
    %c1_62 = arith.constant 1 : index
    %c4_63 = arith.constant 4 : index
    %c0_64 = arith.constant 0 : index
    %52 = vector.load %arg2[%c0_61, %c1_62, %c4_63, %c0_64] : memref<1x4x16x16xf32, #tpu.memory_space<vmem>>, vector<1x1x4x4xf32>
    %53 = vector.shape_cast %52 : vector<1x1x4x4xf32> to vector<4x4xf32>
    %54 = vector.shape_cast %53 : vector<4x4xf32> to vector<1x16xf32>
    %c0_65 = arith.constant 0 : index
    %c2_66 = arith.constant 2 : index
    %c4_67 = arith.constant 4 : index
    %c0_68 = arith.constant 0 : index
    %55 = vector.load %arg2[%c0_65, %c2_66, %c4_67, %c0_68] : memref<1x4x16x16xf32, #tpu.memory_space<vmem>>, vector<1x1x4x4xf32>
    %56 = vector.shape_cast %55 : vector<1x1x4x4xf32> to vector<4x4xf32>
    %57 = vector.shape_cast %56 : vector<4x4xf32> to vector<1x16xf32>
    %c0_69 = arith.constant 0 : index
    %c3_70 = arith.constant 3 : index
    %c4_71 = arith.constant 4 : index
    %c0_72 = arith.constant 0 : index
    %58 = vector.load %arg2[%c0_69, %c3_70, %c4_71, %c0_72] : memref<1x4x16x16xf32, #tpu.memory_space<vmem>>, vector<1x1x4x4xf32>
    %59 = vector.shape_cast %58 : vector<1x1x4x4xf32> to vector<4x4xf32>
    %60 = vector.shape_cast %59 : vector<4x4xf32> to vector<1x16xf32>
    %c0_73 = arith.constant 0 : index
    %c0_74 = arith.constant 0 : index
    %c4_75 = arith.constant 4 : index
    %c4_76 = arith.constant 4 : index
    %61 = vector.load %arg2[%c0_73, %c0_74, %c4_75, %c4_76] : memref<1x4x16x16xf32, #tpu.memory_space<vmem>>, vector<1x1x4x4xf32>
    %62 = vector.shape_cast %61 : vector<1x1x4x4xf32> to vector<4x4xf32>
    %63 = vector.shape_cast %62 : vector<4x4xf32> to vector<1x16xf32>
    %c0_77 = arith.constant 0 : index
    %c1_78 = arith.constant 1 : index
    %c4_79 = arith.constant 4 : index
    %c4_80 = arith.constant 4 : index
    %64 = vector.load %arg2[%c0_77, %c1_78, %c4_79, %c4_80] : memref<1x4x16x16xf32, #tpu.memory_space<vmem>>, vector<1x1x4x4xf32>
    %65 = vector.shape_cast %64 : vector<1x1x4x4xf32> to vector<4x4xf32>
    %66 = vector.shape_cast %65 : vector<4x4xf32> to vector<1x16xf32>
    %c0_81 = arith.constant 0 : index
    %c2_82 = arith.constant 2 : index
    %c4_83 = arith.constant 4 : index
    %c4_84 = arith.constant 4 : index
    %67 = vector.load %arg2[%c0_81, %c2_82, %c4_83, %c4_84] : memref<1x4x16x16xf32, #tpu.memory_space<vmem>>, vector<1x1x4x4xf32>
    %68 = vector.shape_cast %67 : vector<1x1x4x4xf32> to vector<4x4xf32>
    %69 = vector.shape_cast %68 : vector<4x4xf32> to vector<1x16xf32>
    %c0_85 = arith.constant 0 : index
    %c3_86 = arith.constant 3 : index
    %c4_87 = arith.constant 4 : index
    %c4_88 = arith.constant 4 : index
    %70 = vector.load %arg2[%c0_85, %c3_86, %c4_87, %c4_88] : memref<1x4x16x16xf32, #tpu.memory_space<vmem>>, vector<1x1x4x4xf32>
    %71 = vector.shape_cast %70 : vector<1x1x4x4xf32> to vector<4x4xf32>
    %72 = vector.shape_cast %71 : vector<4x4xf32> to vector<1x16xf32>
    %c0_89 = arith.constant 0 : index
    %c0_90 = arith.constant 0 : index
    %c4_91 = arith.constant 4 : index
    %c8_92 = arith.constant 8 : index
    %73 = vector.load %arg2[%c0_89, %c0_90, %c4_91, %c8_92] : memref<1x4x16x16xf32, #tpu.memory_space<vmem>>, vector<1x1x4x4xf32>
    %74 = vector.shape_cast %73 : vector<1x1x4x4xf32> to vector<4x4xf32>
    %75 = vector.shape_cast %74 : vector<4x4xf32> to vector<1x16xf32>
    %c0_93 = arith.constant 0 : index
    %c1_94 = arith.constant 1 : index
    %c4_95 = arith.constant 4 : index
    %c8_96 = arith.constant 8 : index
    %76 = vector.load %arg2[%c0_93, %c1_94, %c4_95, %c8_96] : memref<1x4x16x16xf32, #tpu.memory_space<vmem>>, vector<1x1x4x4xf32>
    %77 = vector.shape_cast %76 : vector<1x1x4x4xf32> to vector<4x4xf32>
    %78 = vector.shape_cast %77 : vector<4x4xf32> to vector<1x16xf32>
    %c0_97 = arith.constant 0 : index
    %c2_98 = arith.constant 2 : index
    %c4_99 = arith.constant 4 : index
    %c8_100 = arith.constant 8 : index
    %79 = vector.load %arg2[%c0_97, %c2_98, %c4_99, %c8_100] : memref<1x4x16x16xf32, #tpu.memory_space<vmem>>, vector<1x1x4x4xf32>
    %80 = vector.shape_cast %79 : vector<1x1x4x4xf32> to vector<4x4xf32>
    %81 = vector.shape_cast %80 : vector<4x4xf32> to vector<1x16xf32>
    %c0_101 = arith.constant 0 : index
    %c3_102 = arith.constant 3 : index
    %c4_103 = arith.constant 4 : index
    %c8_104 = arith.constant 8 : index
    %82 = vector.load %arg2[%c0_101, %c3_102, %c4_103, %c8_104] : memref<1x4x16x16xf32, #tpu.memory_space<vmem>>, vector<1x1x4x4xf32>
    %83 = vector.shape_cast %82 : vector<1x1x4x4xf32> to vector<4x4xf32>
    %84 = vector.shape_cast %83 : vector<4x4xf32> to vector<1x16xf32>
    %c0_105 = arith.constant 0 : index
    %c0_106 = arith.constant 0 : index
    %c4_107 = arith.constant 4 : index
    %c12_108 = arith.constant 12 : index
    %85 = vector.load %arg2[%c0_105, %c0_106, %c4_107, %c12_108] : memref<1x4x16x16xf32, #tpu.memory_space<vmem>>, vector<1x1x4x4xf32>
    %86 = vector.shape_cast %85 : vector<1x1x4x4xf32> to vector<4x4xf32>
    %87 = vector.shape_cast %86 : vector<4x4xf32> to vector<1x16xf32>
    %c0_109 = arith.constant 0 : index
    %c1_110 = arith.constant 1 : index
    %c4_111 = arith.constant 4 : index
    %c12_112 = arith.constant 12 : index
    %88 = vector.load %arg2[%c0_109, %c1_110, %c4_111, %c12_112] : memref<1x4x16x16xf32, #tpu.memory_space<vmem>>, vector<1x1x4x4xf32>
    %89 = vector.shape_cast %88 : vector<1x1x4x4xf32> to vector<4x4xf32>
    %90 = vector.shape_cast %89 : vector<4x4xf32> to vector<1x16xf32>
    %c0_113 = arith.constant 0 : index
    %c2_114 = arith.constant 2 : index
    %c4_115 = arith.constant 4 : index
    %c12_116 = arith.constant 12 : index
    %91 = vector.load %arg2[%c0_113, %c2_114, %c4_115, %c12_116] : memref<1x4x16x16xf32, #tpu.memory_space<vmem>>, vector<1x1x4x4xf32>
    %92 = vector.shape_cast %91 : vector<1x1x4x4xf32> to vector<4x4xf32>
    %93 = vector.shape_cast %92 : vector<4x4xf32> to vector<1x16xf32>
    %c0_117 = arith.constant 0 : index
    %c3_118 = arith.constant 3 : index
    %c4_119 = arith.constant 4 : index
    %c12_120 = arith.constant 12 : index
    %94 = vector.load %arg2[%c0_117, %c3_118, %c4_119, %c12_120] : memref<1x4x16x16xf32, #tpu.memory_space<vmem>>, vector<1x1x4x4xf32>
    %95 = vector.shape_cast %94 : vector<1x1x4x4xf32> to vector<4x4xf32>
    %96 = vector.shape_cast %95 : vector<4x4xf32> to vector<1x16xf32>
    %97 = tpu.concatenate %51, %54, %57, %60, %63, %66, %69, %72, %75, %78, %81, %84, %87, %90, %93, %96 in 1 : vector<1x16xf32>, vector<1x16xf32>, vector<1x16xf32>, vector<1x16xf32>, vector<1x16xf32>, vector<1x16xf32>, vector<1x16xf32>, vector<1x16xf32>, vector<1x16xf32>, vector<1x16xf32>, vector<1x16xf32>, vector<1x16xf32>, vector<1x16xf32>, vector<1x16xf32>, vector<1x16xf32>, vector<1x16xf32> -> vector<1x256xf32>
    %c0_121 = arith.constant 0 : index
    %c0_122 = arith.constant 0 : index
    %c8_123 = arith.constant 8 : index
    %c0_124 = arith.constant 0 : index
    %98 = vector.load %arg2[%c0_121, %c0_122, %c8_123, %c0_124] : memref<1x4x16x16xf32, #tpu.memory_space<vmem>>, vector<1x1x4x4xf32>
    %99 = vector.shape_cast %98 : vector<1x1x4x4xf32> to vector<4x4xf32>
    %100 = vector.shape_cast %99 : vector<4x4xf32> to vector<1x16xf32>
    %c0_125 = arith.constant 0 : index
    %c1_126 = arith.constant 1 : index
    %c8_127 = arith.constant 8 : index
    %c0_128 = arith.constant 0 : index
    %101 = vector.load %arg2[%c0_125, %c1_126, %c8_127, %c0_128] : memref<1x4x16x16xf32, #tpu.memory_space<vmem>>, vector<1x1x4x4xf32>
    %102 = vector.shape_cast %101 : vector<1x1x4x4xf32> to vector<4x4xf32>
    %103 = vector.shape_cast %102 : vector<4x4xf32> to vector<1x16xf32>
    %c0_129 = arith.constant 0 : index
    %c2_130 = arith.constant 2 : index
    %c8_131 = arith.constant 8 : index
    %c0_132 = arith.constant 0 : index
    %104 = vector.load %arg2[%c0_129, %c2_130, %c8_131, %c0_132] : memref<1x4x16x16xf32, #tpu.memory_space<vmem>>, vector<1x1x4x4xf32>
    %105 = vector.shape_cast %104 : vector<1x1x4x4xf32> to vector<4x4xf32>
    %106 = vector.shape_cast %105 : vector<4x4xf32> to vector<1x16xf32>
    %c0_133 = arith.constant 0 : index
    %c3_134 = arith.constant 3 : index
    %c8_135 = arith.constant 8 : index
    %c0_136 = arith.constant 0 : index
    %107 = vector.load %arg2[%c0_133, %c3_134, %c8_135, %c0_136] : memref<1x4x16x16xf32, #tpu.memory_space<vmem>>, vector<1x1x4x4xf32>
    %108 = vector.shape_cast %107 : vector<1x1x4x4xf32> to vector<4x4xf32>
    %109 = vector.shape_cast %108 : vector<4x4xf32> to vector<1x16xf32>
    %c0_137 = arith.constant 0 : index
    %c0_138 = arith.constant 0 : index
    %c8_139 = arith.constant 8 : index
    %c4_140 = arith.constant 4 : index
    %110 = vector.load %arg2[%c0_137, %c0_138, %c8_139, %c4_140] : memref<1x4x16x16xf32, #tpu.memory_space<vmem>>, vector<1x1x4x4xf32>
    %111 = vector.shape_cast %110 : vector<1x1x4x4xf32> to vector<4x4xf32>
    %112 = vector.shape_cast %111 : vector<4x4xf32> to vector<1x16xf32>
    %c0_141 = arith.constant 0 : index
    %c1_142 = arith.constant 1 : index
    %c8_143 = arith.constant 8 : index
    %c4_144 = arith.constant 4 : index
    %113 = vector.load %arg2[%c0_141, %c1_142, %c8_143, %c4_144] : memref<1x4x16x16xf32, #tpu.memory_space<vmem>>, vector<1x1x4x4xf32>
    %114 = vector.shape_cast %113 : vector<1x1x4x4xf32> to vector<4x4xf32>
    %115 = vector.shape_cast %114 : vector<4x4xf32> to vector<1x16xf32>
    %c0_145 = arith.constant 0 : index
    %c2_146 = arith.constant 2 : index
    %c8_147 = arith.constant 8 : index
    %c4_148 = arith.constant 4 : index
    %116 = vector.load %arg2[%c0_145, %c2_146, %c8_147, %c4_148] : memref<1x4x16x16xf32, #tpu.memory_space<vmem>>, vector<1x1x4x4xf32>
    %117 = vector.shape_cast %116 : vector<1x1x4x4xf32> to vector<4x4xf32>
    %118 = vector.shape_cast %117 : vector<4x4xf32> to vector<1x16xf32>
    %c0_149 = arith.constant 0 : index
    %c3_150 = arith.constant 3 : index
    %c8_151 = arith.constant 8 : index
    %c4_152 = arith.constant 4 : index
    %119 = vector.load %arg2[%c0_149, %c3_150, %c8_151, %c4_152] : memref<1x4x16x16xf32, #tpu.memory_space<vmem>>, vector<1x1x4x4xf32>
    %120 = vector.shape_cast %119 : vector<1x1x4x4xf32> to vector<4x4xf32>
    %121 = vector.shape_cast %120 : vector<4x4xf32> to vector<1x16xf32>
    %c0_153 = arith.constant 0 : index
    %c0_154 = arith.constant 0 : index
    %c8_155 = arith.constant 8 : index
    %c8_156 = arith.constant 8 : index
    %122 = vector.load %arg2[%c0_153, %c0_154, %c8_155, %c8_156] : memref<1x4x16x16xf32, #tpu.memory_space<vmem>>, vector<1x1x4x4xf32>
    %123 = vector.shape_cast %122 : vector<1x1x4x4xf32> to vector<4x4xf32>
    %124 = vector.shape_cast %123 : vector<4x4xf32> to vector<1x16xf32>
    %c0_157 = arith.constant 0 : index
    %c1_158 = arith.constant 1 : index
    %c8_159 = arith.constant 8 : index
    %c8_160 = arith.constant 8 : index
    %125 = vector.load %arg2[%c0_157, %c1_158, %c8_159, %c8_160] : memref<1x4x16x16xf32, #tpu.memory_space<vmem>>, vector<1x1x4x4xf32>
    %126 = vector.shape_cast %125 : vector<1x1x4x4xf32> to vector<4x4xf32>
    %127 = vector.shape_cast %126 : vector<4x4xf32> to vector<1x16xf32>
    %c0_161 = arith.constant 0 : index
    %c2_162 = arith.constant 2 : index
    %c8_163 = arith.constant 8 : index
    %c8_164 = arith.constant 8 : index
    %128 = vector.load %arg2[%c0_161, %c2_162, %c8_163, %c8_164] : memref<1x4x16x16xf32, #tpu.memory_space<vmem>>, vector<1x1x4x4xf32>
    %129 = vector.shape_cast %128 : vector<1x1x4x4xf32> to vector<4x4xf32>
    %130 = vector.shape_cast %129 : vector<4x4xf32> to vector<1x16xf32>
    %c0_165 = arith.constant 0 : index
    %c3_166 = arith.constant 3 : index
    %c8_167 = arith.constant 8 : index
    %c8_168 = arith.constant 8 : index
    %131 = vector.load %arg2[%c0_165, %c3_166, %c8_167, %c8_168] : memref<1x4x16x16xf32, #tpu.memory_space<vmem>>, vector<1x1x4x4xf32>
    %132 = vector.shape_cast %131 : vector<1x1x4x4xf32> to vector<4x4xf32>
    %133 = vector.shape_cast %132 : vector<4x4xf32> to vector<1x16xf32>
    %c0_169 = arith.constant 0 : index
    %c0_170 = arith.constant 0 : index
    %c8_171 = arith.constant 8 : index
    %c12_172 = arith.constant 12 : index
    %134 = vector.load %arg2[%c0_169, %c0_170, %c8_171, %c12_172] : memref<1x4x16x16xf32, #tpu.memory_space<vmem>>, vector<1x1x4x4xf32>
    %135 = vector.shape_cast %134 : vector<1x1x4x4xf32> to vector<4x4xf32>
    %136 = vector.shape_cast %135 : vector<4x4xf32> to vector<1x16xf32>
    %c0_173 = arith.constant 0 : index
    %c1_174 = arith.constant 1 : index
    %c8_175 = arith.constant 8 : index
    %c12_176 = arith.constant 12 : index
    %137 = vector.load %arg2[%c0_173, %c1_174, %c8_175, %c12_176] : memref<1x4x16x16xf32, #tpu.memory_space<vmem>>, vector<1x1x4x4xf32>
    %138 = vector.shape_cast %137 : vector<1x1x4x4xf32> to vector<4x4xf32>
    %139 = vector.shape_cast %138 : vector<4x4xf32> to vector<1x16xf32>
    %c0_177 = arith.constant 0 : index
    %c2_178 = arith.constant 2 : index
    %c8_179 = arith.constant 8 : index
    %c12_180 = arith.constant 12 : index
    %140 = vector.load %arg2[%c0_177, %c2_178, %c8_179, %c12_180] : memref<1x4x16x16xf32, #tpu.memory_space<vmem>>, vector<1x1x4x4xf32>
    %141 = vector.shape_cast %140 : vector<1x1x4x4xf32> to vector<4x4xf32>
    %142 = vector.shape_cast %141 : vector<4x4xf32> to vector<1x16xf32>
    %c0_181 = arith.constant 0 : index
    %c3_182 = arith.constant 3 : index
    %c8_183 = arith.constant 8 : index
    %c12_184 = arith.constant 12 : index
    %143 = vector.load %arg2[%c0_181, %c3_182, %c8_183, %c12_184] : memref<1x4x16x16xf32, #tpu.memory_space<vmem>>, vector<1x1x4x4xf32>
    %144 = vector.shape_cast %143 : vector<1x1x4x4xf32> to vector<4x4xf32>
    %145 = vector.shape_cast %144 : vector<4x4xf32> to vector<1x16xf32>
    %146 = tpu.concatenate %100, %103, %106, %109, %112, %115, %118, %121, %124, %127, %130, %133, %136, %139, %142, %145 in 1 : vector<1x16xf32>, vector<1x16xf32>, vector<1x16xf32>, vector<1x16xf32>, vector<1x16xf32>, vector<1x16xf32>, vector<1x16xf32>, vector<1x16xf32>, vector<1x16xf32>, vector<1x16xf32>, vector<1x16xf32>, vector<1x16xf32>, vector<1x16xf32>, vector<1x16xf32>, vector<1x16xf32>, vector<1x16xf32> -> vector<1x256xf32>
    %c0_185 = arith.constant 0 : index
    %c0_186 = arith.constant 0 : index
    %c12_187 = arith.constant 12 : index
    %c0_188 = arith.constant 0 : index
    %147 = vector.load %arg2[%c0_185, %c0_186, %c12_187, %c0_188] : memref<1x4x16x16xf32, #tpu.memory_space<vmem>>, vector<1x1x4x4xf32>
    %148 = vector.shape_cast %147 : vector<1x1x4x4xf32> to vector<4x4xf32>
    %149 = vector.shape_cast %148 : vector<4x4xf32> to vector<1x16xf32>
    %c0_189 = arith.constant 0 : index
    %c1_190 = arith.constant 1 : index
    %c12_191 = arith.constant 12 : index
    %c0_192 = arith.constant 0 : index
    %150 = vector.load %arg2[%c0_189, %c1_190, %c12_191, %c0_192] : memref<1x4x16x16xf32, #tpu.memory_space<vmem>>, vector<1x1x4x4xf32>
    %151 = vector.shape_cast %150 : vector<1x1x4x4xf32> to vector<4x4xf32>
    %152 = vector.shape_cast %151 : vector<4x4xf32> to vector<1x16xf32>
    %c0_193 = arith.constant 0 : index
    %c2_194 = arith.constant 2 : index
    %c12_195 = arith.constant 12 : index
    %c0_196 = arith.constant 0 : index
    %153 = vector.load %arg2[%c0_193, %c2_194, %c12_195, %c0_196] : memref<1x4x16x16xf32, #tpu.memory_space<vmem>>, vector<1x1x4x4xf32>
    %154 = vector.shape_cast %153 : vector<1x1x4x4xf32> to vector<4x4xf32>
    %155 = vector.shape_cast %154 : vector<4x4xf32> to vector<1x16xf32>
    %c0_197 = arith.constant 0 : index
    %c3_198 = arith.constant 3 : index
    %c12_199 = arith.constant 12 : index
    %c0_200 = arith.constant 0 : index
    %156 = vector.load %arg2[%c0_197, %c3_198, %c12_199, %c0_200] : memref<1x4x16x16xf32, #tpu.memory_space<vmem>>, vector<1x1x4x4xf32>
    %157 = vector.shape_cast %156 : vector<1x1x4x4xf32> to vector<4x4xf32>
    %158 = vector.shape_cast %157 : vector<4x4xf32> to vector<1x16xf32>
    %c0_201 = arith.constant 0 : index
    %c0_202 = arith.constant 0 : index
    %c12_203 = arith.constant 12 : index
    %c4_204 = arith.constant 4 : index
    %159 = vector.load %arg2[%c0_201, %c0_202, %c12_203, %c4_204] : memref<1x4x16x16xf32, #tpu.memory_space<vmem>>, vector<1x1x4x4xf32>
    %160 = vector.shape_cast %159 : vector<1x1x4x4xf32> to vector<4x4xf32>
    %161 = vector.shape_cast %160 : vector<4x4xf32> to vector<1x16xf32>
    %c0_205 = arith.constant 0 : index
    %c1_206 = arith.constant 1 : index
    %c12_207 = arith.constant 12 : index
    %c4_208 = arith.constant 4 : index
    %162 = vector.load %arg2[%c0_205, %c1_206, %c12_207, %c4_208] : memref<1x4x16x16xf32, #tpu.memory_space<vmem>>, vector<1x1x4x4xf32>
    %163 = vector.shape_cast %162 : vector<1x1x4x4xf32> to vector<4x4xf32>
    %164 = vector.shape_cast %163 : vector<4x4xf32> to vector<1x16xf32>
    %c0_209 = arith.constant 0 : index
    %c2_210 = arith.constant 2 : index
    %c12_211 = arith.constant 12 : index
    %c4_212 = arith.constant 4 : index
    %165 = vector.load %arg2[%c0_209, %c2_210, %c12_211, %c4_212] : memref<1x4x16x16xf32, #tpu.memory_space<vmem>>, vector<1x1x4x4xf32>
    %166 = vector.shape_cast %165 : vector<1x1x4x4xf32> to vector<4x4xf32>
    %167 = vector.shape_cast %166 : vector<4x4xf32> to vector<1x16xf32>
    %c0_213 = arith.constant 0 : index
    %c3_214 = arith.constant 3 : index
    %c12_215 = arith.constant 12 : index
    %c4_216 = arith.constant 4 : index
    %168 = vector.load %arg2[%c0_213, %c3_214, %c12_215, %c4_216] : memref<1x4x16x16xf32, #tpu.memory_space<vmem>>, vector<1x1x4x4xf32>
    %169 = vector.shape_cast %168 : vector<1x1x4x4xf32> to vector<4x4xf32>
    %170 = vector.shape_cast %169 : vector<4x4xf32> to vector<1x16xf32>
    %c0_217 = arith.constant 0 : index
    %c0_218 = arith.constant 0 : index
    %c12_219 = arith.constant 12 : index
    %c8_220 = arith.constant 8 : index
    %171 = vector.load %arg2[%c0_217, %c0_218, %c12_219, %c8_220] : memref<1x4x16x16xf32, #tpu.memory_space<vmem>>, vector<1x1x4x4xf32>
    %172 = vector.shape_cast %171 : vector<1x1x4x4xf32> to vector<4x4xf32>
    %173 = vector.shape_cast %172 : vector<4x4xf32> to vector<1x16xf32>
    %c0_221 = arith.constant 0 : index
    %c1_222 = arith.constant 1 : index
    %c12_223 = arith.constant 12 : index
    %c8_224 = arith.constant 8 : index
    %174 = vector.load %arg2[%c0_221, %c1_222, %c12_223, %c8_224] : memref<1x4x16x16xf32, #tpu.memory_space<vmem>>, vector<1x1x4x4xf32>
    %175 = vector.shape_cast %174 : vector<1x1x4x4xf32> to vector<4x4xf32>
    %176 = vector.shape_cast %175 : vector<4x4xf32> to vector<1x16xf32>
    %c0_225 = arith.constant 0 : index
    %c2_226 = arith.constant 2 : index
    %c12_227 = arith.constant 12 : index
    %c8_228 = arith.constant 8 : index
    %177 = vector.load %arg2[%c0_225, %c2_226, %c12_227, %c8_228] : memref<1x4x16x16xf32, #tpu.memory_space<vmem>>, vector<1x1x4x4xf32>
    %178 = vector.shape_cast %177 : vector<1x1x4x4xf32> to vector<4x4xf32>
    %179 = vector.shape_cast %178 : vector<4x4xf32> to vector<1x16xf32>
    %c0_229 = arith.constant 0 : index
    %c3_230 = arith.constant 3 : index
    %c12_231 = arith.constant 12 : index
    %c8_232 = arith.constant 8 : index
    %180 = vector.load %arg2[%c0_229, %c3_230, %c12_231, %c8_232] : memref<1x4x16x16xf32, #tpu.memory_space<vmem>>, vector<1x1x4x4xf32>
    %181 = vector.shape_cast %180 : vector<1x1x4x4xf32> to vector<4x4xf32>
    %182 = vector.shape_cast %181 : vector<4x4xf32> to vector<1x16xf32>
    %c0_233 = arith.constant 0 : index
    %c0_234 = arith.constant 0 : index
    %c12_235 = arith.constant 12 : index
    %c12_236 = arith.constant 12 : index
    %183 = vector.load %arg2[%c0_233, %c0_234, %c12_235, %c12_236] : memref<1x4x16x16xf32, #tpu.memory_space<vmem>>, vector<1x1x4x4xf32>
    %184 = vector.shape_cast %183 : vector<1x1x4x4xf32> to vector<4x4xf32>
    %185 = vector.shape_cast %184 : vector<4x4xf32> to vector<1x16xf32>
    %c0_237 = arith.constant 0 : index
    %c1_238 = arith.constant 1 : index
    %c12_239 = arith.constant 12 : index
    %c12_240 = arith.constant 12 : index
    %186 = vector.load %arg2[%c0_237, %c1_238, %c12_239, %c12_240] : memref<1x4x16x16xf32, #tpu.memory_space<vmem>>, vector<1x1x4x4xf32>
    %187 = vector.shape_cast %186 : vector<1x1x4x4xf32> to vector<4x4xf32>
    %188 = vector.shape_cast %187 : vector<4x4xf32> to vector<1x16xf32>
    %c0_241 = arith.constant 0 : index
    %c2_242 = arith.constant 2 : index
    %c12_243 = arith.constant 12 : index
    %c12_244 = arith.constant 12 : index
    %189 = vector.load %arg2[%c0_241, %c2_242, %c12_243, %c12_244] : memref<1x4x16x16xf32, #tpu.memory_space<vmem>>, vector<1x1x4x4xf32>
    %190 = vector.shape_cast %189 : vector<1x1x4x4xf32> to vector<4x4xf32>
    %191 = vector.shape_cast %190 : vector<4x4xf32> to vector<1x16xf32>
    %c0_245 = arith.constant 0 : index
    %c3_246 = arith.constant 3 : index
    %c12_247 = arith.constant 12 : index
    %c12_248 = arith.constant 12 : index
    %192 = vector.load %arg2[%c0_245, %c3_246, %c12_247, %c12_248] : memref<1x4x16x16xf32, #tpu.memory_space<vmem>>, vector<1x1x4x4xf32>
    %193 = vector.shape_cast %192 : vector<1x1x4x4xf32> to vector<4x4xf32>
    %194 = vector.shape_cast %193 : vector<4x4xf32> to vector<1x16xf32>
    %195 = tpu.concatenate %149, %152, %155, %158, %161, %164, %167, %170, %173, %176, %179, %182, %185, %188, %191, %194 in 1 : vector<1x16xf32>, vector<1x16xf32>, vector<1x16xf32>, vector<1x16xf32>, vector<1x16xf32>, vector<1x16xf32>, vector<1x16xf32>, vector<1x16xf32>, vector<1x16xf32>, vector<1x16xf32>, vector<1x16xf32>, vector<1x16xf32>, vector<1x16xf32>, vector<1x16xf32>, vector<1x16xf32>, vector<1x16xf32> -> vector<1x256xf32>
    %196 = tpu.concatenate %48, %97, %146, %195 in 0 : vector<1x256xf32>, vector<1x256xf32>, vector<1x256xf32>, vector<1x256xf32> -> vector<4x256xf32>
    %c0_249 = arith.constant 0 : index
    %c0_250 = arith.constant 0 : index
    %c0_251 = arith.constant 0 : index
    %197 = vector.load %arg3[%c0_249, %c0_250, %c0_251] : memref<1x4x256xf32, #tpu.memory_space<vmem>>, vector<1x4x256xf32>
    %198 = vector.shape_cast %197 : vector<1x4x256xf32> to vector<4x256xf32>
    %199 = vector.shape_cast %196 : vector<4x256xf32> to vector<1x4x256xf32>
    tpu.vector_store %arg3[%c0_249, %c0_250, %c0_251], %199 {strides = array<i32>} : memref<1x4x256xf32, #tpu.memory_space<vmem>>, vector<1x4x256xf32>,
    return
  }
  func.func @transform_0(%arg0: i32, %arg1: i32) -> (i32, i32, i32, i32) {
    %c0_i32 = arith.constant 0 : i32
    %c0_i32_0 = arith.constant 0 : i32
    %c0_i32_1 = arith.constant 0 : i32
    return %arg0, %c0_i32, %arg1, %c0_i32_0 : i32, i32, i32, i32
  }
  func.func @transform_1(%arg0: i32, %arg1: i32) -> (i32, i32, i32) {
    %c0_i32 = arith.constant 0 : i32
    %c0_i32_0 = arith.constant 0 : i32
    return %arg0, %arg1, %c0_i32 : i32, i32, i32
  }
}

</mosaic_0001>

<llo_original>
// kernel: tpu_custom_call.1
$region0: #{tpu_custom_call.1}
  #allocation0 [shape = 'u32[]', space=smem, size = 0x4, offset = 0x4, fixed_abs, tag = 'smem constant byte address 0x4 - core index']
  #allocation1 [shape = 'u32[144,128]{1,0:T(1,128)}', space=vmem, size = 0x12000, scoped, tag = 'internal scratch']
  %s0 = inlined_call_operand.hbm [shape: f32[2,4,16,16], index: 0, kind: input, shape index: {}]
  %s1 = inlined_call_operand.hbm [shape: f32[2,4,256], index: 1, kind: output, shape index: {}]
  %s2 = sld [smem:[#allocation0]]
  $region41: #{tpu_custom_call.1} parent=0
    _
  %s4 = ssub.s32 1, %s2
  %s5 = scalar_select 0, %s4, %s2
  $region1: #{tpu_custom_call.1} parent=0
    #allocation2 [shape = 'u8[65536]{0}', space=vmem, size = 0x10000, scoped, tag = 'input window, operand 0']
    #allocation3 [shape = 's32[2]{0}', space=sflag, size = 0x8, scoped, tag = 'scoped memory for tpu_custom_call.1']
    #allocation4 [shape = 's32[2]{0}', space=sflag, size = 0x8, scoped, tag = 'scoped memory for tpu_custom_call.1']
    #allocation5 [shape = 'u8[8192]{0}', space=vmem, size = 0x2000, scoped, tag = 'output window, operand 0']
    %6 = vsyncpa [#allocation3], 0
    %s7 = scalar_lea.sflag [#allocation3], 1
    %8 = vsyncpa %s7, 0
    %9 = vsyncpa [#allocation4], 0
    %s10 = scalar_lea.sflag [#allocation4], 1
    %11 = vsyncpa %s10, 0
    loop: start=0, step=1, limit=4
    $region2: #{tpu_custom_call.1} parent=1 // loop_pre_header
      _
    $region3: #{tpu_custom_call.1} parent=1 // loop_header
      %s13 = sphi 0, %s17
      %p14 = scmp.ge.s32.totalorder %s13, 4
      %s20 = sphi 0, %s32
      %s21 = sphi 0, %s28
      %s22 = sphi 0, %s20
      %s23 = sphi 0, %s21
      %s24 = sphi 0, %s22
      %s25 = sphi 0, %s23
      %s37 = sphi 0, %s39
      %s40 = sphi 0, %s37
      %s41 = sphi 0, %s40
      %s57 = sphi 0, %s41
      %s65 = sphi 0, %s67
      %s68 = sphi 0, %s65
      %s69 = sphi 0, %s68
      %s85 = sphi 0, %s69
    $region4: #{tpu_custom_call.1} parent=1 // loop_header_branch
      %16 = sbr.rel (%p14) target = $region8
    $region5: #{tpu_custom_call.1} parent=1 // loop_body
      %s18 = ssub.s32 %s13, 1
      %s19 = ssub.s32 %s13, 2
      %s26 = sadd.s32 1, %s21
      %p27 = scmp.ge.s32.totalorder %s26, 1
      %s28 = scalar_select %p27, 0, %s26
      %s29 = sadd.s32 1, %s20
      %s30 = scalar_select %p27, %s29, %s20
      %p31 = scmp.ge.s32.totalorder %s30, 2
      %s32 = scalar_select %p31, 0, %s30
      %s33 = ssub.s32 %s20, %s32
      %s34 = ssub.s32 %s21, %s28
      %s35 = sor.u32 %s33, %s34
      %p36 = scmp.eq.s32.totalorder %s35, 0
      %s38 = sadd.s32 %s37, 1
      %s39 = scalar_select %p36, %s37, %s38
      %p42 = pneg %p36
      %p43 = scmp.eq.s32.totalorder %s13, 1
      %p44 = por %p42, %p43
      %p45 = scmp.ne.s32.totalorder %s37, %s40
      %p46 = scmp.eq.s32.totalorder %s13, 0
      %p47 = por %p45, %p46
      %p48 = scmp.ne.s32.totalorder %s37, %s40
      %p49 = scmp.eq.s32.totalorder %s18, 1
      %p50 = por %p48, %p49
      %p51 = scmp.ne.s32.totalorder %s40, %s41
      %p52 = scmp.eq.s32.totalorder %s18, 0
      %p53 = por %p51, %p52
      %p54 = scmp.ne.s32.totalorder %s40, %s41
      %p55 = scmp.eq.s32.totalorder %s19, 1
      %p56 = por %p54, %p55
      %p58 = scmp.ne.s32.totalorder %s41, %s57
      %p59 = scmp.eq.s32.totalorder %s19, 0
      %p60 = por %p58, %p59
      %s61 = ssub.s32 %s20, %s32
      %s62 = ssub.s32 %s21, %s28
      %s63 = sor.u32 %s61, %s62
      %p64 = scmp.eq.s32.totalorder %s63, 0
      %s66 = sadd.s32 %s65, 1
      %s67 = scalar_select %p64, %s65, %s66
      %p70 = pneg %p64
      %p71 = scmp.eq.s32.totalorder %s13, 1
      %p72 = por %p70, %p71
      %p73 = scmp.ne.s32.totalorder %s65, %s68
      %p74 = scmp.eq.s32.totalorder %s13, 0
      %p75 = por %p73, %p74
      %p76 = scmp.ne.s32.totalorder %s65, %s68
      %p77 = scmp.eq.s32.totalorder %s18, 1
      %p78 = por %p76, %p77
      %p79 = scmp.ne.s32.totalorder %s68, %s69
      %p80 = scmp.eq.s32.totalorder %s18, 0
      %p81 = por %p79, %p80
      %p82 = scmp.ne.s32.totalorder %s68, %s69
      %p83 = scmp.eq.s32.totalorder %s19, 1
      %p84 = por %p82, %p83
      %p86 = scmp.ne.s32.totalorder %s69, %s85
      %p87 = scmp.eq.s32.totalorder %s19, 0
      %p88 = por %p86, %p87
      %p89 = scmp.le.s32.totalorder 1, %s13
      %p90 = scmp.lt.s32.totalorder %s13, 3
      %p91 = pnand %p89, %p90
      %p92 = pneg %p91
      // Predicated region
      $region9: #{tpu_custom_call.1} parent=5 // pred_check
        _
      $region10: #{tpu_custom_call.1} parent=5 // pred_check_branch
        %94 = sbr.rel (%p91) target = $region12
      $region11: #{tpu_custom_call.1} parent=5 // pred_region
        %s95 = ssub.s32 %s13, 1
      $region12: #{tpu_custom_call.1} parent=5 // pred_fallthru
        _
      %p96 = scmp.lt.s32.totalorder %s13, 2
      // Predicated region
      $region13: #{tpu_custom_call.1} parent=5 // pred_check
        %p97 = pneg %p96
      $region14: #{tpu_custom_call.1} parent=5 // pred_check_branch
        %99 = sbr.rel (%p97) target = $region16
      $region15: #{tpu_custom_call.1} parent=5 // pred_region
        // Predicated region
        $region17: #{tpu_custom_call.1} parent=15 // pred_check
          %p100 = pneg %p47
        $region18: #{tpu_custom_call.1} parent=15 // pred_check_branch
          %102 = sbr.rel (%p100) target = $region20
        $region19: #{tpu_custom_call.1} parent=15 // pred_region
          %s103 = sand.u32 %s37, 1
          %s104 = scalar_lea.sflag [#allocation3], %s103
          %s105 = sand.u32 %s37, 1
          %s106 = smul.addr %s105, 64
          %s107 = scalar_lea.vmem [#allocation2], %s106
          %s108 = smul.u32 2, %s21
          %s110 = ssub.s32 1024, 1024
          %111 = vsyncadd %s104, %s110
          %s112 = smul.addr %s20, 8
          %s113 = sadd.s32 %s108, %s112
          %s114 = smul.addr %s113, 128
          %s115 = scalar_lea.hbm %s0, %s114
          %s116 = sshll.u32 %s107, 4
          %s117 = int_to_ptr.vmem [resolvable:$true] %s116
          %122 = dma.hbm_to_vmem [thread:$0]  %s115, 1024, %s117, %s104, 128, 128, 8
        $region20: #{tpu_custom_call.1} parent=15 // pred_fallthru
          _
      $region16: #{tpu_custom_call.1} parent=5 // pred_fallthru
        _
      %p123 = scmp.le.s32.totalorder 1, %s13
      %p124 = scmp.lt.s32.totalorder %s13, 3
      %p125 = pnand %p123, %p124
      %p126 = pneg %p125
      // Predicated region
      $region21: #{tpu_custom_call.1} parent=5 // pred_check
        _
      $region22: #{tpu_custom_call.1} parent=5 // pred_check_branch
        %128 = sbr.rel (%p125) target = $region24
      $region23: #{tpu_custom_call.1} parent=5 // pred_region
        %s129 = ssub.s32 %s13, 1
        %s130 = sand.u32 %s40, 1
        %s131 = scalar_lea.sflag [#allocation3], %s130
        %s132 = sand.u32 %s40, 1
        %s133 = smul.addr %s132, 64
        %s134 = scalar_lea.vmem [#allocation2], %s133
        // Predicated region
        $region25: #{tpu_custom_call.1} parent=23 // pred_check
          %p135 = pneg %p53
        $region26: #{tpu_custom_call.1} parent=23 // pred_check_branch
          %137 = sbr.rel (%p135) target = $region28
        $region27: #{tpu_custom_call.1} parent=23 // pred_region
          %138 = dma.done %s131, 1024
        $region28: #{tpu_custom_call.1} parent=23 // pred_fallthru
          _
        %s139 = sand.u32 %s40, 1
        %s140 = scalar_lea.sflag [#allocation3], %s139
        %s141 = sand.u32 %s40, 1
        %s142 = smul.addr %s141, 64
        %s143 = scalar_lea.vmem [#allocation2], %s142
        %p144 = pneg %p53
        %p145 = pneg %p50
        %p146 = pneg %p81
        %p147 = pneg %p78
        %s148 = sand.u32 %s68, 1
        %s149 = scalar_lea.sflag [#allocation4], %s148
        %s150 = sand.u32 %s68, 1
        %s151 = smul.addr %s150, 8
        %s152 = scalar_lea.vmem [#allocation5], %s151
        %s153 = smul.u32 2, %s23
        %v154 = vld [vmem:[%s134] sm:$0xf]
        %v156 = vunpack.c.l.s4 1983009808
        %v157 = vunpack.c.0.s8 %v156
        %v158 = vlaneseq
        %v159 = vshrl.u32 %v158, 7
        %v160 = vsub.s32 %v157, %v159
        %v161 = vrot.slane %v154, %v160
        %v162 = vcombine.high %v161, 0.0
        %v164 = vunpack.c.l.s4 1934713408
        %v165 = vunpack.c.0.s8 %v164
        %v166 = vlaneseq
        %v167 = vshrl.u32 %v166, 7
        %v168 = vsub.s32 %v165, %v167
        %v169 = vrot.slane %v161, %v168
        %v171 = vunpack.c.l.s4 1934713408
        %v172 = vunpack.c.0.s8 %v171
        %v173 = vlaneseq
        %v174 = vshrl.u32 %v173, 7
        %v175 = vsub.s32 %v172, %v174
        %v176 = vrot.slane %v162, %v175
        %v177 = vcombine.high %v169, 0.0
        %v178 = vcombine.high %v176, 0.0
        %180 = vrot.lane.b32.xlu0 %v177, 4
        %v181 = vpop.permute.xlu0 %180
        %184 = vrot.lane.b32.xlu0 %v176, 8
        %v185 = vpop.permute.xlu0 %184
        %188 = vrot.lane.b32.xlu0 %v178, 12
        %v189 = vpop.permute.xlu0 %188
        %vm191 = vcmask 31744
        %v192 = vsel %vm191, %v169, %v181
        %vm193 = vcmask 64512
        %v194 = vsel %vm193, %v192, %v185
        %vm195 = vcmask 97280
        %v196 = vsel %vm195, %v194, %v189
        %s197 = scalar_lea.vmem %s134, 16 [#allocation2]
        %v198 = vld [vmem:[%s197] sm:$0xf]
        %v200 = vunpack.c.l.s4 1983009808
        %v201 = vunpack.c.0.s8 %v200
        %v202 = vlaneseq
        %v203 = vshrl.u32 %v202, 7
        %v204 = vsub.s32 %v201, %v203
        %v205 = vrot.slane %v198, %v204
        %v206 = vcombine.high %v205, 0.0
        %v208 = vunpack.c.l.s4 1934713408
        %v209 = vunpack.c.0.s8 %v208
        %v210 = vlaneseq
        %v211 = vshrl.u32 %v210, 7
        %v212 = vsub.s32 %v209, %v211
        %v213 = vrot.slane %v205, %v212
        %v215 = vunpack.c.l.s4 1934713408
        %v216 = vunpack.c.0.s8 %v215
        %v217 = vlaneseq
        %v218 = vshrl.u32 %v217, 7
        %v219 = vsub.s32 %v216, %v218
        %v220 = vrot.slane %v206, %v219
        %v221 = vcombine.high %v213, 0.0
        %v222 = vcombine.high %v220, 0.0
        %224 = vrot.lane.b32.xlu0 %v221, 4
        %v225 = vpop.permute.xlu0 %224
        %228 = vrot.lane.b32.xlu0 %v220, 8
        %v229 = vpop.permute.xlu0 %228
        %232 = vrot.lane.b32.xlu0 %v222, 12
        %v233 = vpop.permute.xlu0 %232
        %v235 = vsel %vm191, %v213, %v225
        %v236 = vsel %vm193, %v235, %v229
        %v237 = vsel %vm195, %v236, %v233
        %s238 = scalar_lea.vmem %s134, 32 [#allocation2]
        %v239 = vld [vmem:[%s238] sm:$0xf]
        %v241 = vunpack.c.l.s4 1983009808
        %v242 = vunpack.c.0.s8 %v241
        %v243 = vlaneseq
        %v244 = vshrl.u32 %v243, 7
        %v245 = vsub.s32 %v242, %v244
        %v246 = vrot.slane %v239, %v245
        %v247 = vcombine.high %v246, 0.0
        %v249 = vunpack.c.l.s4 1934713408
        %v250 = vunpack.c.0.s8 %v249
        %v251 = vlaneseq
        %v252 = vshrl.u32 %v251, 7
        %v253 = vsub.s32 %v250, %v252
        %v254 = vrot.slane %v246, %v253
        %v256 = vunpack.c.l.s4 1934713408
        %v257 = vunpack.c.0.s8 %v256
        %v258 = vlaneseq
        %v259 = vshrl.u32 %v258, 7
        %v260 = vsub.s32 %v257, %v259
        %v261 = vrot.slane %v247, %v260
        %v262 = vcombine.high %v254, 0.0
        %v263 = vcombine.high %v261, 0.0
        %265 = vrot.lane.b32.xlu0 %v262, 4
        %v266 = vpop.permute.xlu0 %265
        %269 = vrot.lane.b32.xlu0 %v261, 8
        %v270 = vpop.permute.xlu0 %269
        %273 = vrot.lane.b32.xlu0 %v263, 12
        %v274 = vpop.permute.xlu0 %273
        %v276 = vsel %vm191, %v254, %v266
        %v277 = vsel %vm193, %v276, %v270
        %v278 = vsel %vm195, %v277, %v274
        %s279 = scalar_lea.vmem %s134, 48 [#allocation2]
        %v280 = vld [vmem:[%s279] sm:$0xf]
        %v282 = vunpack.c.l.s4 1983009808
        %v283 = vunpack.c.0.s8 %v282
        %v284 = vlaneseq
        %v285 = vshrl.u32 %v284, 7
        %v286 = vsub.s32 %v283, %v285
        %v287 = vrot.slane %v280, %v286
        %v288 = vcombine.high %v287, 0.0
        %v290 = vunpack.c.l.s4 1934713408
        %v291 = vunpack.c.0.s8 %v290
        %v292 = vlaneseq
        %v293 = vshrl.u32 %v292, 7
        %v294 = vsub.s32 %v291, %v293
        %v295 = vrot.slane %v287, %v294
        %v297 = vunpack.c.l.s4 1934713408
        %v298 = vunpack.c.0.s8 %v297
        %v299 = vlaneseq
        %v300 = vshrl.u32 %v299, 7
        %v301 = vsub.s32 %v298, %v300
        %v302 = vrot.slane %v288, %v301
        %v303 = vcombine.high %v295, 0.0
        %v304 = vcombine.high %v302, 0.0
        %306 = vrot.lane.b32.xlu0 %v303, 4
        %v307 = vpop.permute.xlu0 %306
        %310 = vrot.lane.b32.xlu0 %v302, 8
        %v311 = vpop.permute.xlu0 %310
        %314 = vrot.lane.b32.xlu0 %v304, 12
        %v315 = vpop.permute.xlu0 %314
        %v317 = vsel %vm191, %v295, %v307
        %v318 = vsel %vm193, %v317, %v311
        %v319 = vsel %vm195, %v318, %v315
        %321 = vrot.lane.b32.xlu0 %v154, 124
        %v322 = vpop.permute.xlu0 %321
        %v325 = vunpack.c.l.s4 1983009808
        %v326 = vunpack.c.0.s8 %v325
        %v327 = vlaneseq
        %v328 = vshrl.u32 %v327, 7
        %v329 = vsub.s32 %v326, %v328
        %v330 = vrot.slane %v322, %v329
        %v331 = vcombine.high %v330, 0.0
        %v333 = vunpack.c.l.s4 1934713408
        %v334 = vunpack.c.0.s8 %v333
        %v335 = vlaneseq
        %v336 = vshrl.u32 %v335, 7
        %v337 = vsub.s32 %v334, %v336
        %v338 = vrot.slane %v330, %v337
        %v340 = vunpack.c.l.s4 1934713408
        %v341 = vunpack.c.0.s8 %v340
        %v342 = vlaneseq
        %v343 = vshrl.u32 %v342, 7
        %v344 = vsub.s32 %v341, %v343
        %v345 = vrot.slane %v331, %v344
        %v346 = vcombine.high %v338, 0.0
        %v347 = vcombine.high %v345, 0.0
        %349 = vrot.lane.b32.xlu0 %v346, 4
        %v350 = vpop.permute.xlu0 %349
        %353 = vrot.lane.b32.xlu0 %v345, 8
        %v354 = vpop.permute.xlu0 %353
        %357 = vrot.lane.b32.xlu0 %v347, 12
        %v358 = vpop.permute.xlu0 %357
        %v360 = vsel %vm191, %v338, %v350
        %v361 = vsel %vm193, %v360, %v354
        %v362 = vsel %vm195, %v361, %v358
        %364 = vrot.lane.b32.xlu0 %v198, 124
        %v365 = vpop.permute.xlu0 %364
        %v368 = vunpack.c.l.s4 1983009808
        %v369 = vunpack.c.0.s8 %v368
        %v370 = vlaneseq
        %v371 = vshrl.u32 %v370, 7
        %v372 = vsub.s32 %v369, %v371
        %v373 = vrot.slane %v365, %v372
        %v374 = vcombine.high %v373, 0.0
        %v376 = vunpack.c.l.s4 1934713408
        %v377 = vunpack.c.0.s8 %v376
        %v378 = vlaneseq
        %v379 = vshrl.u32 %v378, 7
        %v380 = vsub.s32 %v377, %v379
        %v381 = vrot.slane %v373, %v380
        %v383 = vunpack.c.l.s4 1934713408
        %v384 = vunpack.c.0.s8 %v383
        %v385 = vlaneseq
        %v386 = vshrl.u32 %v385, 7
        %v387 = vsub.s32 %v384, %v386
        %v388 = vrot.slane %v374, %v387
        %v389 = vcombine.high %v381, 0.0
        %v390 = vcombine.high %v388, 0.0
        %392 = vrot.lane.b32.xlu0 %v389, 4
        %v393 = vpop.permute.xlu0 %392
        %396 = vrot.lane.b32.xlu0 %v388, 8
        %v397 = vpop.permute.xlu0 %396
        %400 = vrot.lane.b32.xlu0 %v390, 12
        %v401 = vpop.permute.xlu0 %400
        %v403 = vsel %vm191, %v381, %v393
        %v404 = vsel %vm193, %v403, %v397
        %v405 = vsel %vm195, %v404, %v401
        %407 = vrot.lane.b32.xlu0 %v239, 124
        %v408 = vpop.permute.xlu0 %407
        %v411 = vunpack.c.l.s4 1983009808
        %v412 = vunpack.c.0.s8 %v411
        %v413 = vlaneseq
        %v414 = vshrl.u32 %v413, 7
        %v415 = vsub.s32 %v412, %v414
        %v416 = vrot.slane %v408, %v415
        %v417 = vcombine.high %v416, 0.0
        %v419 = vunpack.c.l.s4 1934713408
        %v420 = vunpack.c.0.s8 %v419
        %v421 = vlaneseq
        %v422 = vshrl.u32 %v421, 7
        %v423 = vsub.s32 %v420, %v422
        %v424 = vrot.slane %v416, %v423
        %v426 = vunpack.c.l.s4 1934713408
        %v427 = vunpack.c.0.s8 %v426
        %v428 = vlaneseq
        %v429 = vshrl.u32 %v428, 7
        %v430 = vsub.s32 %v427, %v429
        %v431 = vrot.slane %v417, %v430
        %v432 = vcombine.high %v424, 0.0
        %v433 = vcombine.high %v431, 0.0
        %435 = vrot.lane.b32.xlu0 %v432, 4
        %v436 = vpop.permute.xlu0 %435
        %439 = vrot.lane.b32.xlu0 %v431, 8
        %v440 = vpop.permute.xlu0 %439
        %443 = vrot.lane.b32.xlu0 %v433, 12
        %v444 = vpop.permute.xlu0 %443
        %v446 = vsel %vm191, %v424, %v436
        %v447 = vsel %vm193, %v446, %v440
        %v448 = vsel %vm195, %v447, %v444
        %450 = vrot.lane.b32.xlu0 %v280, 124
        %v451 = vpop.permute.xlu0 %450
        %v454 = vunpack.c.l.s4 1983009808
        %v455 = vunpack.c.0.s8 %v454
        %v456 = vlaneseq
        %v457 = vshrl.u32 %v456, 7
        %v458 = vsub.s32 %v455, %v457
        %v459 = vrot.slane %v451, %v458
        %v460 = vcombine.high %v459, 0.0
        %v462 = vunpack.c.l.s4 1934713408
        %v463 = vunpack.c.0.s8 %v462
        %v464 = vlaneseq
        %v465 = vshrl.u32 %v464, 7
        %v466 = vsub.s32 %v463, %v465
        %v467 = vrot.slane %v459, %v466
        %v469 = vunpack.c.l.s4 1934713408
        %v470 = vunpack.c.0.s8 %v469
        %v471 = vlaneseq
        %v472 = vshrl.u32 %v471, 7
        %v473 = vsub.s32 %v470, %v472
        %v474 = vrot.slane %v460, %v473
        %v475 = vcombine.high %v467, 0.0
        %v476 = vcombine.high %v474, 0.0
        %478 = vrot.lane.b32.xlu0 %v475, 4
        %v479 = vpop.permute.xlu0 %478
        %482 = vrot.lane.b32.xlu0 %v474, 8
        %v483 = vpop.permute.xlu0 %482
        %486 = vrot.lane.b32.xlu0 %v476, 12
        %v487 = vpop.permute.xlu0 %486
        %v489 = vsel %vm191, %v467, %v479
        %v490 = vsel %vm193, %v489, %v483
        %v491 = vsel %vm195, %v490, %v487
        %492 = vrot.lane.b32.xlu0 %v154, 120
        %v493 = vpop.permute.xlu0 %492
        %v496 = vunpack.c.l.s4 1983009808
        %v497 = vunpack.c.0.s8 %v496
        %v498 = vlaneseq
        %v499 = vshrl.u32 %v498, 7
        %v500 = vsub.s32 %v497, %v499
        %v501 = vrot.slane %v493, %v500
        %v502 = vcombine.high %v501, 0.0
        %v504 = vunpack.c.l.s4 1934713408
        %v505 = vunpack.c.0.s8 %v504
        %v506 = vlaneseq
        %v507 = vshrl.u32 %v506, 7
        %v508 = vsub.s32 %v505, %v507
        %v509 = vrot.slane %v501, %v508
        %v511 = vunpack.c.l.s4 1934713408
        %v512 = vunpack.c.0.s8 %v511
        %v513 = vlaneseq
        %v514 = vshrl.u32 %v513, 7
        %v515 = vsub.s32 %v512, %v514
        %v516 = vrot.slane %v502, %v515
        %v517 = vcombine.high %v509, 0.0
        %v518 = vcombine.high %v516, 0.0
        %520 = vrot.lane.b32.xlu0 %v517, 4
        %v521 = vpop.permute.xlu0 %520
        %524 = vrot.lane.b32.xlu0 %v516, 8
        %v525 = vpop.permute.xlu0 %524
        %528 = vrot.lane.b32.xlu0 %v518, 12
        %v529 = vpop.permute.xlu0 %528
        %v531 = vsel %vm191, %v509, %v521
        %v532 = vsel %vm193, %v531, %v525
        %v533 = vsel %vm195, %v532, %v529
        %534 = vrot.lane.b32.xlu0 %v198, 120
        %v535 = vpop.permute.xlu0 %534
        %v538 = vunpack.c.l.s4 1983009808
        %v539 = vunpack.c.0.s8 %v538
        %v540 = vlaneseq
        %v541 = vshrl.u32 %v540, 7
        %v542 = vsub.s32 %v539, %v541
        %v543 = vrot.slane %v535, %v542
        %v544 = vcombine.high %v543, 0.0
        %v546 = vunpack.c.l.s4 1934713408
        %v547 = vunpack.c.0.s8 %v546
        %v548 = vlaneseq
        %v549 = vshrl.u32 %v548, 7
        %v550 = vsub.s32 %v547, %v549
        %v551 = vrot.slane %v543, %v550
        %v553 = vunpack.c.l.s4 1934713408
        %v554 = vunpack.c.0.s8 %v553
        %v555 = vlaneseq
        %v556 = vshrl.u32 %v555, 7
        %v557 = vsub.s32 %v554, %v556
        %v558 = vrot.slane %v544, %v557
        %v559 = vcombine.high %v551, 0.0
        %v560 = vcombine.high %v558, 0.0
        %562 = vrot.lane.b32.xlu0 %v559, 4
        %v563 = vpop.permute.xlu0 %562
        %566 = vrot.lane.b32.xlu0 %v558, 8
        %v567 = vpop.permute.xlu0 %566
        %570 = vrot.lane.b32.xlu0 %v560, 12
        %v571 = vpop.permute.xlu0 %570
        %v573 = vsel %vm191, %v551, %v563
        %v574 = vsel %vm193, %v573, %v567
        %v575 = vsel %vm195, %v574, %v571
        %576 = vrot.lane.b32.xlu0 %v239, 120
        %v577 = vpop.permute.xlu0 %576
        %v580 = vunpack.c.l.s4 1983009808
        %v581 = vunpack.c.0.s8 %v580
        %v582 = vlaneseq
        %v583 = vshrl.u32 %v582, 7
        %v584 = vsub.s32 %v581, %v583
        %v585 = vrot.slane %v577, %v584
        %v586 = vcombine.high %v585, 0.0
        %v588 = vunpack.c.l.s4 1934713408
        %v589 = vunpack.c.0.s8 %v588
        %v590 = vlaneseq
        %v591 = vshrl.u32 %v590, 7
        %v592 = vsub.s32 %v589, %v591
        %v593 = vrot.slane %v585, %v592
        %v595 = vunpack.c.l.s4 1934713408
        %v596 = vunpack.c.0.s8 %v595
        %v597 = vlaneseq
        %v598 = vshrl.u32 %v597, 7
        %v599 = vsub.s32 %v596, %v598
        %v600 = vrot.slane %v586, %v599
        %v601 = vcombine.high %v593, 0.0
        %v602 = vcombine.high %v600, 0.0
        %604 = vrot.lane.b32.xlu0 %v601, 4
        %v605 = vpop.permute.xlu0 %604
        %608 = vrot.lane.b32.xlu0 %v600, 8
        %v609 = vpop.permute.xlu0 %608
        %612 = vrot.lane.b32.xlu0 %v602, 12
        %v613 = vpop.permute.xlu0 %612
        %v615 = vsel %vm191, %v593, %v605
        %v616 = vsel %vm193, %v615, %v609
        %v617 = vsel %vm195, %v616, %v613
        %618 = vrot.lane.b32.xlu0 %v280, 120
        %v619 = vpop.permute.xlu0 %618
        %v622 = vunpack.c.l.s4 1983009808
        %v623 = vunpack.c.0.s8 %v622
        %v624 = vlaneseq
        %v625 = vshrl.u32 %v624, 7
        %v626 = vsub.s32 %v623, %v625
        %v627 = vrot.slane %v619, %v626
        %v628 = vcombine.high %v627, 0.0
        %v630 = vunpack.c.l.s4 1934713408
        %v631 = vunpack.c.0.s8 %v630
        %v632 = vlaneseq
        %v633 = vshrl.u32 %v632, 7
        %v634 = vsub.s32 %v631, %v633
        %v635 = vrot.slane %v627, %v634
        %v637 = vunpack.c.l.s4 1934713408
        %v638 = vunpack.c.0.s8 %v637
        %v639 = vlaneseq
        %v640 = vshrl.u32 %v639, 7
        %v641 = vsub.s32 %v638, %v640
        %v642 = vrot.slane %v628, %v641
        %v643 = vcombine.high %v635, 0.0
        %v644 = vcombine.high %v642, 0.0
        %646 = vrot.lane.b32.xlu0 %v643, 4
        %v647 = vpop.permute.xlu0 %646
        %650 = vrot.lane.b32.xlu0 %v642, 8
        %v651 = vpop.permute.xlu0 %650
        %654 = vrot.lane.b32.xlu0 %v644, 12
        %v655 = vpop.permute.xlu0 %654
        %v657 = vsel %vm191, %v635, %v647
        %v658 = vsel %vm193, %v657, %v651
        %v659 = vsel %vm195, %v658, %v655
        %660 = vrot.lane.b32.xlu0 %v154, 116
        %v661 = vpop.permute.xlu0 %660
        %v664 = vunpack.c.l.s4 1983009808
        %v665 = vunpack.c.0.s8 %v664
        %v666 = vlaneseq
        %v667 = vshrl.u32 %v666, 7
        %v668 = vsub.s32 %v665, %v667
        %v669 = vrot.slane %v661, %v668
        %v670 = vcombine.high %v669, 0.0
        %v672 = vunpack.c.l.s4 1934713408
        %v673 = vunpack.c.0.s8 %v672
        %v674 = vlaneseq
        %v675 = vshrl.u32 %v674, 7
        %v676 = vsub.s32 %v673, %v675
        %v677 = vrot.slane %v669, %v676
        %v679 = vunpack.c.l.s4 1934713408
        %v680 = vunpack.c.0.s8 %v679
        %v681 = vlaneseq
        %v682 = vshrl.u32 %v681, 7
        %v683 = vsub.s32 %v680, %v682
        %v684 = vrot.slane %v670, %v683
        %v685 = vcombine.high %v677, 0.0
        %v686 = vcombine.high %v684, 0.0
        %688 = vrot.lane.b32.xlu0 %v685, 4
        %v689 = vpop.permute.xlu0 %688
        %692 = vrot.lane.b32.xlu0 %v684, 8
        %v693 = vpop.permute.xlu0 %692
        %696 = vrot.lane.b32.xlu0 %v686, 12
        %v697 = vpop.permute.xlu0 %696
        %v699 = vsel %vm191, %v677, %v689
        %v700 = vsel %vm193, %v699, %v693
        %v701 = vsel %vm195, %v700, %v697
        %702 = vrot.lane.b32.xlu0 %v198, 116
        %v703 = vpop.permute.xlu0 %702
        %v706 = vunpack.c.l.s4 1983009808
        %v707 = vunpack.c.0.s8 %v706
        %v708 = vlaneseq
        %v709 = vshrl.u32 %v708, 7
        %v710 = vsub.s32 %v707, %v709
        %v711 = vrot.slane %v703, %v710
        %v712 = vcombine.high %v711, 0.0
        %v714 = vunpack.c.l.s4 1934713408
        %v715 = vunpack.c.0.s8 %v714
        %v716 = vlaneseq
        %v717 = vshrl.u32 %v716, 7
        %v718 = vsub.s32 %v715, %v717
        %v719 = vrot.slane %v711, %v718
        %v721 = vunpack.c.l.s4 1934713408
        %v722 = vunpack.c.0.s8 %v721
        %v723 = vlaneseq
        %v724 = vshrl.u32 %v723, 7
        %v725 = vsub.s32 %v722, %v724
        %v726 = vrot.slane %v712, %v725
        %v727 = vcombine.high %v719, 0.0
        %v728 = vcombine.high %v726, 0.0
        %730 = vrot.lane.b32.xlu0 %v727, 4
        %v731 = vpop.permute.xlu0 %730
        %734 = vrot.lane.b32.xlu0 %v726, 8
        %v735 = vpop.permute.xlu0 %734
        %738 = vrot.lane.b32.xlu0 %v728, 12
        %v739 = vpop.permute.xlu0 %738
        %v741 = vsel %vm191, %v719, %v731
        %v742 = vsel %vm193, %v741, %v735
        %v743 = vsel %vm195, %v742, %v739
        %744 = vrot.lane.b32.xlu0 %v239, 116
        %v745 = vpop.permute.xlu0 %744
        %v748 = vunpack.c.l.s4 1983009808
        %v749 = vunpack.c.0.s8 %v748
        %v750 = vlaneseq
        %v751 = vshrl.u32 %v750, 7
        %v752 = vsub.s32 %v749, %v751
        %v753 = vrot.slane %v745, %v752
        %v754 = vcombine.high %v753, 0.0
        %v756 = vunpack.c.l.s4 1934713408
        %v757 = vunpack.c.0.s8 %v756
        %v758 = vlaneseq
        %v759 = vshrl.u32 %v758, 7
        %v760 = vsub.s32 %v757, %v759
        %v761 = vrot.slane %v753, %v760
        %v763 = vunpack.c.l.s4 1934713408
        %v764 = vunpack.c.0.s8 %v763
        %v765 = vlaneseq
        %v766 = vshrl.u32 %v765, 7
        %v767 = vsub.s32 %v764, %v766
        %v768 = vrot.slane %v754, %v767
        %v769 = vcombine.high %v761, 0.0
        %v770 = vcombine.high %v768, 0.0
        %772 = vrot.lane.b32.xlu0 %v769, 4
        %v773 = vpop.permute.xlu0 %772
        %776 = vrot.lane.b32.xlu0 %v768, 8
        %v777 = vpop.permute.xlu0 %776
        %780 = vrot.lane.b32.xlu0 %v770, 12
        %v781 = vpop.permute.xlu0 %780
        %v783 = vsel %vm191, %v761, %v773
        %v784 = vsel %vm193, %v783, %v777
        %v785 = vsel %vm195, %v784, %v781
        %786 = vrot.lane.b32.xlu0 %v280, 116
        %v787 = vpop.permute.xlu0 %786
        %v790 = vunpack.c.l.s4 1983009808
        %v791 = vunpack.c.0.s8 %v790
        %v792 = vlaneseq
        %v793 = vshrl.u32 %v792, 7
        %v794 = vsub.s32 %v791, %v793
        %v795 = vrot.slane %v787, %v794
        %v796 = vcombine.high %v795, 0.0
        %v798 = vunpack.c.l.s4 1934713408
        %v799 = vunpack.c.0.s8 %v798
        %v800 = vlaneseq
        %v801 = vshrl.u32 %v800, 7
        %v802 = vsub.s32 %v799, %v801
        %v803 = vrot.slane %v795, %v802
        %v805 = vunpack.c.l.s4 1934713408
        %v806 = vunpack.c.0.s8 %v805
        %v807 = vlaneseq
        %v808 = vshrl.u32 %v807, 7
        %v809 = vsub.s32 %v806, %v808
        %v810 = vrot.slane %v796, %v809
        %v811 = vcombine.high %v803, 0.0
        %v812 = vcombine.high %v810, 0.0
        %814 = vrot.lane.b32.xlu0 %v811, 4
        %v815 = vpop.permute.xlu0 %814
        %818 = vrot.lane.b32.xlu0 %v810, 8
        %v819 = vpop.permute.xlu0 %818
        %822 = vrot.lane.b32.xlu0 %v812, 12
        %v823 = vpop.permute.xlu0 %822
        %v825 = vsel %vm191, %v803, %v815
        %v826 = vsel %vm193, %v825, %v819
        %v827 = vsel %vm195, %v826, %v823
        %829 = vrot.lane.b32.xlu0 %v237, 16
        %v830 = vpop.permute.xlu0 %829
        %833 = vrot.lane.b32.xlu0 %v278, 32
        %v834 = vpop.permute.xlu0 %833
        %837 = vrot.lane.b32.xlu0 %v319, 48
        %v838 = vpop.permute.xlu0 %837
        %841 = vrot.lane.b32.xlu0 %v362, 64
        %v842 = vpop.permute.xlu0 %841
        %845 = vrot.lane.b32.xlu0 %v405, 80
        %v846 = vpop.permute.xlu0 %845
        %849 = vrot.lane.b32.xlu0 %v448, 96
        %v850 = vpop.permute.xlu0 %849
        %853 = vrot.lane.b32.xlu0 %v491, 112
        %v854 = vpop.permute.xlu0 %853
        %857 = vrot.lane.b32.xlu0 %v575, 16
        %v858 = vpop.permute.xlu0 %857
        %861 = vrot.lane.b32.xlu0 %v617, 32
        %v862 = vpop.permute.xlu0 %861
        %865 = vrot.lane.b32.xlu0 %v659, 48
        %v866 = vpop.permute.xlu0 %865
        %869 = vrot.lane.b32.xlu0 %v701, 64
        %v870 = vpop.permute.xlu0 %869
        %873 = vrot.lane.b32.xlu0 %v743, 80
        %v874 = vpop.permute.xlu0 %873
        %877 = vrot.lane.b32.xlu0 %v785, 96
        %v878 = vpop.permute.xlu0 %877
        %881 = vrot.lane.b32.xlu0 %v827, 112
        %v882 = vpop.permute.xlu0 %881
        %vm884 = vcmask 130048
        %v885 = vsel %vm884, %v196, %v830
        %vm886 = vcmask 261120
        %v887 = vsel %vm886, %v885, %v834
        %vm888 = vcmask 392192
        %v889 = vsel %vm888, %v887, %v838
        %vm890 = vcmask 523264
        %v891 = vsel %vm890, %v889, %v842
        %vm892 = vcmask 654336
        %v893 = vsel %vm892, %v891, %v846
        %vm894 = vcmask 785408
        %v895 = vsel %vm894, %v893, %v850
        %vm896 = vcmask 916480
        %v897 = vsel %vm896, %v895, %v854
        %v898 = vsel %vm884, %v533, %v858
        %v899 = vsel %vm886, %v898, %v862
        %v900 = vsel %vm888, %v899, %v866
        %v901 = vsel %vm890, %v900, %v870
        %v902 = vsel %vm892, %v901, %v874
        %v903 = vsel %vm894, %v902, %v878
        %v904 = vsel %vm896, %v903, %v882
        %v905 = vld [vmem:[%s134 + $0x4] sm:$0xf]
        %v907 = vunpack.c.l.s4 1983009808
        %v908 = vunpack.c.0.s8 %v907
        %v909 = vlaneseq
        %v910 = vshrl.u32 %v909, 7
        %v911 = vsub.s32 %v908, %v910
        %v912 = vrot.slane %v905, %v911
        %v913 = vcombine.high %v912, 0.0
        %v915 = vunpack.c.l.s4 1934713408
        %v916 = vunpack.c.0.s8 %v915
        %v917 = vlaneseq
        %v918 = vshrl.u32 %v917, 7
        %v919 = vsub.s32 %v916, %v918
        %v920 = vrot.slane %v912, %v919
        %v922 = vunpack.c.l.s4 1934713408
        %v923 = vunpack.c.0.s8 %v922
        %v924 = vlaneseq
        %v925 = vshrl.u32 %v924, 7
        %v926 = vsub.s32 %v923, %v925
        %v927 = vrot.slane %v913, %v926
        %v928 = vcombine.high %v920, 0.0
        %v929 = vcombine.high %v927, 0.0
        %931 = vrot.lane.b32.xlu0 %v928, 4
        %v932 = vpop.permute.xlu0 %931
        %935 = vrot.lane.b32.xlu0 %v927, 8
        %v936 = vpop.permute.xlu0 %935
        %939 = vrot.lane.b32.xlu0 %v929, 12
        %v940 = vpop.permute.xlu0 %939
        %v942 = vsel %vm191, %v920, %v932
        %v943 = vsel %vm193, %v942, %v936
        %v944 = vsel %vm195, %v943, %v940
        %v945 = vld [vmem:[%s197 + $0x4] sm:$0xf]
        %v947 = vunpack.c.l.s4 1983009808
        %v948 = vunpack.c.0.s8 %v947
        %v949 = vlaneseq
        %v950 = vshrl.u32 %v949, 7
        %v951 = vsub.s32 %v948, %v950
        %v952 = vrot.slane %v945, %v951
        %v953 = vcombine.high %v952, 0.0
        %v955 = vunpack.c.l.s4 1934713408
        %v956 = vunpack.c.0.s8 %v955
        %v957 = vlaneseq
        %v958 = vshrl.u32 %v957, 7
        %v959 = vsub.s32 %v956, %v958
        %v960 = vrot.slane %v952, %v959
        %v962 = vunpack.c.l.s4 1934713408
        %v963 = vunpack.c.0.s8 %v962
        %v964 = vlaneseq
        %v965 = vshrl.u32 %v964, 7
        %v966 = vsub.s32 %v963, %v965
        %v967 = vrot.slane %v953, %v966
        %v968 = vcombine.high %v960, 0.0
        %v969 = vcombine.high %v967, 0.0
        %971 = vrot.lane.b32.xlu0 %v968, 4
        %v972 = vpop.permute.xlu0 %971
        %975 = vrot.lane.b32.xlu0 %v967, 8
        %v976 = vpop.permute.xlu0 %975
        %979 = vrot.lane.b32.xlu0 %v969, 12
        %v980 = vpop.permute.xlu0 %979
        %v982 = vsel %vm191, %v960, %v972
        %v983 = vsel %vm193, %v982, %v976
        %v984 = vsel %vm195, %v983, %v980
        %v985 = vld [vmem:[%s238 + $0x4] sm:$0xf]
        %v987 = vunpack.c.l.s4 1983009808
        %v988 = vunpack.c.0.s8 %v987
        %v989 = vlaneseq
        %v990 = vshrl.u32 %v989, 7
        %v991 = vsub.s32 %v988, %v990
        %v992 = vrot.slane %v985, %v991
        %v993 = vcombine.high %v992, 0.0
        %v995 = vunpack.c.l.s4 1934713408
        %v996 = vunpack.c.0.s8 %v995
        %v997 = vlaneseq
        %v998 = vshrl.u32 %v997, 7
        %v999 = vsub.s32 %v996, %v998
        %v1000 = vrot.slane %v992, %v999
        %v1002 = vunpack.c.l.s4 1934713408
        %v1003 = vunpack.c.0.s8 %v1002
        %v1004 = vlaneseq
        %v1005 = vshrl.u32 %v1004, 7
        %v1006 = vsub.s32 %v1003, %v1005
        %v1007 = vrot.slane %v993, %v1006
        %v1008 = vcombine.high %v1000, 0.0
        %v1009 = vcombine.high %v1007, 0.0
        %1011 = vrot.lane.b32.xlu0 %v1008, 4
        %v1012 = vpop.permute.xlu0 %1011
        %1015 = vrot.lane.b32.xlu0 %v1007, 8
        %v1016 = vpop.permute.xlu0 %1015
        %1019 = vrot.lane.b32.xlu0 %v1009, 12
        %v1020 = vpop.permute.xlu0 %1019
        %v1022 = vsel %vm191, %v1000, %v1012
        %v1023 = vsel %vm193, %v1022, %v1016
        %v1024 = vsel %vm195, %v1023, %v1020
        %v1025 = vld [vmem:[%s279 + $0x4] sm:$0xf]
        %v1027 = vunpack.c.l.s4 1983009808
        %v1028 = vunpack.c.0.s8 %v1027
        %v1029 = vlaneseq
        %v1030 = vshrl.u32 %v1029, 7
        %v1031 = vsub.s32 %v1028, %v1030
        %v1032 = vrot.slane %v1025, %v1031
        %v1033 = vcombine.high %v1032, 0.0
        %v1035 = vunpack.c.l.s4 1934713408
        %v1036 = vunpack.c.0.s8 %v1035
        %v1037 = vlaneseq
        %v1038 = vshrl.u32 %v1037, 7
        %v1039 = vsub.s32 %v1036, %v1038
        %v1040 = vrot.slane %v1032, %v1039
        %v1042 = vunpack.c.l.s4 1934713408
        %v1043 = vunpack.c.0.s8 %v1042
        %v1044 = vlaneseq
        %v1045 = vshrl.u32 %v1044, 7
        %v1046 = vsub.s32 %v1043, %v1045
        %v1047 = vrot.slane %v1033, %v1046
        %v1048 = vcombine.high %v1040, 0.0
        %v1049 = vcombine.high %v1047, 0.0
        %1051 = vrot.lane.b32.xlu0 %v1048, 4
        %v1052 = vpop.permute.xlu0 %1051
        %1055 = vrot.lane.b32.xlu0 %v1047, 8
        %v1056 = vpop.permute.xlu0 %1055
        %1059 = vrot.lane.b32.xlu0 %v1049, 12
        %v1060 = vpop.permute.xlu0 %1059
        %v1062 = vsel %vm191, %v1040, %v1052
        %v1063 = vsel %vm193, %v1062, %v1056
        %v1064 = vsel %vm195, %v1063, %v1060
        %1066 = vrot.lane.b32.xlu0 %v905, 124
        %v1067 = vpop.permute.xlu0 %1066
        %v1070 = vunpack.c.l.s4 1983009808
        %v1071 = vunpack.c.0.s8 %v1070
        %v1072 = vlaneseq
        %v1073 = vshrl.u32 %v1072, 7
        %v1074 = vsub.s32 %v1071, %v1073
        %v1075 = vrot.slane %v1067, %v1074
        %v1076 = vcombine.high %v1075, 0.0
        %v1078 = vunpack.c.l.s4 1934713408
        %v1079 = vunpack.c.0.s8 %v1078
        %v1080 = vlaneseq
        %v1081 = vshrl.u32 %v1080, 7
        %v1082 = vsub.s32 %v1079, %v1081
        %v1083 = vrot.slane %v1075, %v1082
        %v1085 = vunpack.c.l.s4 1934713408
        %v1086 = vunpack.c.0.s8 %v1085
        %v1087 = vlaneseq
        %v1088 = vshrl.u32 %v1087, 7
        %v1089 = vsub.s32 %v1086, %v1088
        %v1090 = vrot.slane %v1076, %v1089
        %v1091 = vcombine.high %v1083, 0.0
        %v1092 = vcombine.high %v1090, 0.0
        %1094 = vrot.lane.b32.xlu0 %v1091, 4
        %v1095 = vpop.permute.xlu0 %1094
        %1098 = vrot.lane.b32.xlu0 %v1090, 8
        %v1099 = vpop.permute.xlu0 %1098
        %1102 = vrot.lane.b32.xlu0 %v1092, 12
        %v1103 = vpop.permute.xlu0 %1102
        %v1105 = vsel %vm191, %v1083, %v1095
        %v1106 = vsel %vm193, %v1105, %v1099
        %v1107 = vsel %vm195, %v1106, %v1103
        %1109 = vrot.lane.b32.xlu0 %v945, 124
        %v1110 = vpop.permute.xlu0 %1109
        %v1113 = vunpack.c.l.s4 1983009808
        %v1114 = vunpack.c.0.s8 %v1113
        %v1115 = vlaneseq
        %v1116 = vshrl.u32 %v1115, 7
        %v1117 = vsub.s32 %v1114, %v1116
        %v1118 = vrot.slane %v1110, %v1117
        %v1119 = vcombine.high %v1118, 0.0
        %v1121 = vunpack.c.l.s4 1934713408
        %v1122 = vunpack.c.0.s8 %v1121
        %v1123 = vlaneseq
        %v1124 = vshrl.u32 %v1123, 7
        %v1125 = vsub.s32 %v1122, %v1124
        %v1126 = vrot.slane %v1118, %v1125
        %v1128 = vunpack.c.l.s4 1934713408
        %v1129 = vunpack.c.0.s8 %v1128
        %v1130 = vlaneseq
        %v1131 = vshrl.u32 %v1130, 7
        %v1132 = vsub.s32 %v1129, %v1131
        %v1133 = vrot.slane %v1119, %v1132
        %v1134 = vcombine.high %v1126, 0.0
        %v1135 = vcombine.high %v1133, 0.0
        %1137 = vrot.lane.b32.xlu0 %v1134, 4
        %v1138 = vpop.permute.xlu0 %1137
        %1141 = vrot.lane.b32.xlu0 %v1133, 8
        %v1142 = vpop.permute.xlu0 %1141
        %1145 = vrot.lane.b32.xlu0 %v1135, 12
        %v1146 = vpop.permute.xlu0 %1145
        %v1148 = vsel %vm191, %v1126, %v1138
        %v1149 = vsel %vm193, %v1148, %v1142
        %v1150 = vsel %vm195, %v1149, %v1146
        %1152 = vrot.lane.b32.xlu0 %v985, 124
        %v1153 = vpop.permute.xlu0 %1152
        %v1156 = vunpack.c.l.s4 1983009808
        %v1157 = vunpack.c.0.s8 %v1156
        %v1158 = vlaneseq
        %v1159 = vshrl.u32 %v1158, 7
        %v1160 = vsub.s32 %v1157, %v1159
        %v1161 = vrot.slane %v1153, %v1160
        %v1162 = vcombine.high %v1161, 0.0
        %v1164 = vunpack.c.l.s4 1934713408
        %v1165 = vunpack.c.0.s8 %v1164
        %v1166 = vlaneseq
        %v1167 = vshrl.u32 %v1166, 7
        %v1168 = vsub.s32 %v1165, %v1167
        %v1169 = vrot.slane %v1161, %v1168
        %v1171 = vunpack.c.l.s4 1934713408
        %v1172 = vunpack.c.0.s8 %v1171
        %v1173 = vlaneseq
        %v1174 = vshrl.u32 %v1173, 7
        %v1175 = vsub.s32 %v1172, %v1174
        %v1176 = vrot.slane %v1162, %v1175
        %v1177 = vcombine.high %v1169, 0.0
        %v1178 = vcombine.high %v1176, 0.0
        %1180 = vrot.lane.b32.xlu0 %v1177, 4
        %v1181 = vpop.permute.xlu0 %1180
        %1184 = vrot.lane.b32.xlu0 %v1176, 8
        %v1185 = vpop.permute.xlu0 %1184
        %1188 = vrot.lane.b32.xlu0 %v1178, 12
        %v1189 = vpop.permute.xlu0 %1188
        %v1191 = vsel %vm191, %v1169, %v1181
        %v1192 = vsel %vm193, %v1191, %v1185
        %v1193 = vsel %vm195, %v1192, %v1189
        %1195 = vrot.lane.b32.xlu0 %v1025, 124
        %v1196 = vpop.permute.xlu0 %1195
        %v1199 = vunpack.c.l.s4 1983009808
        %v1200 = vunpack.c.0.s8 %v1199
        %v1201 = vlaneseq
        %v1202 = vshrl.u32 %v1201, 7
        %v1203 = vsub.s32 %v1200, %v1202
        %v1204 = vrot.slane %v1196, %v1203
        %v1205 = vcombine.high %v1204, 0.0
        %v1207 = vunpack.c.l.s4 1934713408
        %v1208 = vunpack.c.0.s8 %v1207
        %v1209 = vlaneseq
        %v1210 = vshrl.u32 %v1209, 7
        %v1211 = vsub.s32 %v1208, %v1210
        %v1212 = vrot.slane %v1204, %v1211
        %v1214 = vunpack.c.l.s4 1934713408
        %v1215 = vunpack.c.0.s8 %v1214
        %v1216 = vlaneseq
        %v1217 = vshrl.u32 %v1216, 7
        %v1218 = vsub.s32 %v1215, %v1217
        %v1219 = vrot.slane %v1205, %v1218
        %v1220 = vcombine.high %v1212, 0.0
        %v1221 = vcombine.high %v1219, 0.0
        %1223 = vrot.lane.b32.xlu0 %v1220, 4
        %v1224 = vpop.permute.xlu0 %1223
        %1227 = vrot.lane.b32.xlu0 %v1219, 8
        %v1228 = vpop.permute.xlu0 %1227
        %1231 = vrot.lane.b32.xlu0 %v1221, 12
        %v1232 = vpop.permute.xlu0 %1231
        %v1234 = vsel %vm191, %v1212, %v1224
        %v1235 = vsel %vm193, %v1234, %v1228
        %v1236 = vsel %vm195, %v1235, %v1232
        %1237 = vrot.lane.b32.xlu0 %v905, 120
        %v1238 = vpop.permute.xlu0 %1237
        %v1241 = vunpack.c.l.s4 1983009808
        %v1242 = vunpack.c.0.s8 %v1241
        %v1243 = vlaneseq
        %v1244 = vshrl.u32 %v1243, 7
        %v1245 = vsub.s32 %v1242, %v1244
        %v1246 = vrot.slane %v1238, %v1245
        %v1247 = vcombine.high %v1246, 0.0
        %v1249 = vunpack.c.l.s4 1934713408
        %v1250 = vunpack.c.0.s8 %v1249
        %v1251 = vlaneseq
        %v1252 = vshrl.u32 %v1251, 7
        %v1253 = vsub.s32 %v1250, %v1252
        %v1254 = vrot.slane %v1246, %v1253
        %v1256 = vunpack.c.l.s4 1934713408
        %v1257 = vunpack.c.0.s8 %v1256
        %v1258 = vlaneseq
        %v1259 = vshrl.u32 %v1258, 7
        %v1260 = vsub.s32 %v1257, %v1259
        %v1261 = vrot.slane %v1247, %v1260
        %v1262 = vcombine.high %v1254, 0.0
        %v1263 = vcombine.high %v1261, 0.0
        %1265 = vrot.lane.b32.xlu0 %v1262, 4
        %v1266 = vpop.permute.xlu0 %1265
        %1269 = vrot.lane.b32.xlu0 %v1261, 8
        %v1270 = vpop.permute.xlu0 %1269
        %1273 = vrot.lane.b32.xlu0 %v1263, 12
        %v1274 = vpop.permute.xlu0 %1273
        %v1276 = vsel %vm191, %v1254, %v1266
        %v1277 = vsel %vm193, %v1276, %v1270
        %v1278 = vsel %vm195, %v1277, %v1274
        %1279 = vrot.lane.b32.xlu0 %v945, 120
        %v1280 = vpop.permute.xlu0 %1279
        %v1283 = vunpack.c.l.s4 1983009808
        %v1284 = vunpack.c.0.s8 %v1283
        %v1285 = vlaneseq
        %v1286 = vshrl.u32 %v1285, 7
        %v1287 = vsub.s32 %v1284, %v1286
        %v1288 = vrot.slane %v1280, %v1287
        %v1289 = vcombine.high %v1288, 0.0
        %v1291 = vunpack.c.l.s4 1934713408
        %v1292 = vunpack.c.0.s8 %v1291
        %v1293 = vlaneseq
        %v1294 = vshrl.u32 %v1293, 7
        %v1295 = vsub.s32 %v1292, %v1294
        %v1296 = vrot.slane %v1288, %v1295
        %v1298 = vunpack.c.l.s4 1934713408
        %v1299 = vunpack.c.0.s8 %v1298
        %v1300 = vlaneseq
        %v1301 = vshrl.u32 %v1300, 7
        %v1302 = vsub.s32 %v1299, %v1301
        %v1303 = vrot.slane %v1289, %v1302
        %v1304 = vcombine.high %v1296, 0.0
        %v1305 = vcombine.high %v1303, 0.0
        %1307 = vrot.lane.b32.xlu0 %v1304, 4
        %v1308 = vpop.permute.xlu0 %1307
        %1311 = vrot.lane.b32.xlu0 %v1303, 8
        %v1312 = vpop.permute.xlu0 %1311
        %1315 = vrot.lane.b32.xlu0 %v1305, 12
        %v1316 = vpop.permute.xlu0 %1315
        %v1318 = vsel %vm191, %v1296, %v1308
        %v1319 = vsel %vm193, %v1318, %v1312
        %v1320 = vsel %vm195, %v1319, %v1316
        %1321 = vrot.lane.b32.xlu0 %v985, 120
        %v1322 = vpop.permute.xlu0 %1321
        %v1325 = vunpack.c.l.s4 1983009808
        %v1326 = vunpack.c.0.s8 %v1325
        %v1327 = vlaneseq
        %v1328 = vshrl.u32 %v1327, 7
        %v1329 = vsub.s32 %v1326, %v1328
        %v1330 = vrot.slane %v1322, %v1329
        %v1331 = vcombine.high %v1330, 0.0
        %v1333 = vunpack.c.l.s4 1934713408
        %v1334 = vunpack.c.0.s8 %v1333
        %v1335 = vlaneseq
        %v1336 = vshrl.u32 %v1335, 7
        %v1337 = vsub.s32 %v1334, %v1336
        %v1338 = vrot.slane %v1330, %v1337
        %v1340 = vunpack.c.l.s4 1934713408
        %v1341 = vunpack.c.0.s8 %v1340
        %v1342 = vlaneseq
        %v1343 = vshrl.u32 %v1342, 7
        %v1344 = vsub.s32 %v1341, %v1343
        %v1345 = vrot.slane %v1331, %v1344
        %v1346 = vcombine.high %v1338, 0.0
        %v1347 = vcombine.high %v1345, 0.0
        %1349 = vrot.lane.b32.xlu0 %v1346, 4
        %v1350 = vpop.permute.xlu0 %1349
        %1353 = vrot.lane.b32.xlu0 %v1345, 8
        %v1354 = vpop.permute.xlu0 %1353
        %1357 = vrot.lane.b32.xlu0 %v1347, 12
        %v1358 = vpop.permute.xlu0 %1357
        %v1360 = vsel %vm191, %v1338, %v1350
        %v1361 = vsel %vm193, %v1360, %v1354
        %v1362 = vsel %vm195, %v1361, %v1358
        %1363 = vrot.lane.b32.xlu0 %v1025, 120
        %v1364 = vpop.permute.xlu0 %1363
        %v1367 = vunpack.c.l.s4 1983009808
        %v1368 = vunpack.c.0.s8 %v1367
        %v1369 = vlaneseq
        %v1370 = vshrl.u32 %v1369, 7
        %v1371 = vsub.s32 %v1368, %v1370
        %v1372 = vrot.slane %v1364, %v1371
        %v1373 = vcombine.high %v1372, 0.0
        %v1375 = vunpack.c.l.s4 1934713408
        %v1376 = vunpack.c.0.s8 %v1375
        %v1377 = vlaneseq
        %v1378 = vshrl.u32 %v1377, 7
        %v1379 = vsub.s32 %v1376, %v1378
        %v1380 = vrot.slane %v1372, %v1379
        %v1382 = vunpack.c.l.s4 1934713408
        %v1383 = vunpack.c.0.s8 %v1382
        %v1384 = vlaneseq
        %v1385 = vshrl.u32 %v1384, 7
        %v1386 = vsub.s32 %v1383, %v1385
        %v1387 = vrot.slane %v1373, %v1386
        %v1388 = vcombine.high %v1380, 0.0
        %v1389 = vcombine.high %v1387, 0.0
        %1391 = vrot.lane.b32.xlu0 %v1388, 4
        %v1392 = vpop.permute.xlu0 %1391
        %1395 = vrot.lane.b32.xlu0 %v1387, 8
        %v1396 = vpop.permute.xlu0 %1395
        %1399 = vrot.lane.b32.xlu0 %v1389, 12
        %v1400 = vpop.permute.xlu0 %1399
        %v1402 = vsel %vm191, %v1380, %v1392
        %v1403 = vsel %vm193, %v1402, %v1396
        %v1404 = vsel %vm195, %v1403, %v1400
        %1405 = vrot.lane.b32.xlu0 %v905, 116
        %v1406 = vpop.permute.xlu0 %1405
        %v1409 = vunpack.c.l.s4 1983009808
        %v1410 = vunpack.c.0.s8 %v1409
        %v1411 = vlaneseq
        %v1412 = vshrl.u32 %v1411, 7
        %v1413 = vsub.s32 %v1410, %v1412
        %v1414 = vrot.slane %v1406, %v1413
        %v1415 = vcombine.high %v1414, 0.0
        %v1417 = vunpack.c.l.s4 1934713408
        %v1418 = vunpack.c.0.s8 %v1417
        %v1419 = vlaneseq
        %v1420 = vshrl.u32 %v1419, 7
        %v1421 = vsub.s32 %v1418, %v1420
        %v1422 = vrot.slane %v1414, %v1421
        %v1424 = vunpack.c.l.s4 1934713408
        %v1425 = vunpack.c.0.s8 %v1424
        %v1426 = vlaneseq
        %v1427 = vshrl.u32 %v1426, 7
        %v1428 = vsub.s32 %v1425, %v1427
        %v1429 = vrot.slane %v1415, %v1428
        %v1430 = vcombine.high %v1422, 0.0
        %v1431 = vcombine.high %v1429, 0.0
        %1433 = vrot.lane.b32.xlu0 %v1430, 4
        %v1434 = vpop.permute.xlu0 %1433
        %1437 = vrot.lane.b32.xlu0 %v1429, 8
        %v1438 = vpop.permute.xlu0 %1437
        %1441 = vrot.lane.b32.xlu0 %v1431, 12
        %v1442 = vpop.permute.xlu0 %1441
        %v1444 = vsel %vm191, %v1422, %v1434
        %v1445 = vsel %vm193, %v1444, %v1438
        %v1446 = vsel %vm195, %v1445, %v1442
        %1447 = vrot.lane.b32.xlu0 %v945, 116
        %v1448 = vpop.permute.xlu0 %1447
        %v1451 = vunpack.c.l.s4 1983009808
        %v1452 = vunpack.c.0.s8 %v1451
        %v1453 = vlaneseq
        %v1454 = vshrl.u32 %v1453, 7
        %v1455 = vsub.s32 %v1452, %v1454
        %v1456 = vrot.slane %v1448, %v1455
        %v1457 = vcombine.high %v1456, 0.0
        %v1459 = vunpack.c.l.s4 1934713408
        %v1460 = vunpack.c.0.s8 %v1459
        %v1461 = vlaneseq
        %v1462 = vshrl.u32 %v1461, 7
        %v1463 = vsub.s32 %v1460, %v1462
        %v1464 = vrot.slane %v1456, %v1463
        %v1466 = vunpack.c.l.s4 1934713408
        %v1467 = vunpack.c.0.s8 %v1466
        %v1468 = vlaneseq
        %v1469 = vshrl.u32 %v1468, 7
        %v1470 = vsub.s32 %v1467, %v1469
        %v1471 = vrot.slane %v1457, %v1470
        %v1472 = vcombine.high %v1464, 0.0
        %v1473 = vcombine.high %v1471, 0.0
        %1475 = vrot.lane.b32.xlu0 %v1472, 4
        %v1476 = vpop.permute.xlu0 %1475
        %1479 = vrot.lane.b32.xlu0 %v1471, 8
        %v1480 = vpop.permute.xlu0 %1479
        %1483 = vrot.lane.b32.xlu0 %v1473, 12
        %v1484 = vpop.permute.xlu0 %1483
        %v1486 = vsel %vm191, %v1464, %v1476
        %v1487 = vsel %vm193, %v1486, %v1480
        %v1488 = vsel %vm195, %v1487, %v1484
        %1489 = vrot.lane.b32.xlu0 %v985, 116
        %v1490 = vpop.permute.xlu0 %1489
        %v1493 = vunpack.c.l.s4 1983009808
        %v1494 = vunpack.c.0.s8 %v1493
        %v1495 = vlaneseq
        %v1496 = vshrl.u32 %v1495, 7
        %v1497 = vsub.s32 %v1494, %v1496
        %v1498 = vrot.slane %v1490, %v1497
        %v1499 = vcombine.high %v1498, 0.0
        %v1501 = vunpack.c.l.s4 1934713408
        %v1502 = vunpack.c.0.s8 %v1501
        %v1503 = vlaneseq
        %v1504 = vshrl.u32 %v1503, 7
        %v1505 = vsub.s32 %v1502, %v1504
        %v1506 = vrot.slane %v1498, %v1505
        %v1508 = vunpack.c.l.s4 1934713408
        %v1509 = vunpack.c.0.s8 %v1508
        %v1510 = vlaneseq
        %v1511 = vshrl.u32 %v1510, 7
        %v1512 = vsub.s32 %v1509, %v1511
        %v1513 = vrot.slane %v1499, %v1512
        %v1514 = vcombine.high %v1506, 0.0
        %v1515 = vcombine.high %v1513, 0.0
        %1517 = vrot.lane.b32.xlu0 %v1514, 4
        %v1518 = vpop.permute.xlu0 %1517
        %1521 = vrot.lane.b32.xlu0 %v1513, 8
        %v1522 = vpop.permute.xlu0 %1521
        %1525 = vrot.lane.b32.xlu0 %v1515, 12
        %v1526 = vpop.permute.xlu0 %1525
        %v1528 = vsel %vm191, %v1506, %v1518
        %v1529 = vsel %vm193, %v1528, %v1522
        %v1530 = vsel %vm195, %v1529, %v1526
        %1531 = vrot.lane.b32.xlu0 %v1025, 116
        %v1532 = vpop.permute.xlu0 %1531
        %v1535 = vunpack.c.l.s4 1983009808
        %v1536 = vunpack.c.0.s8 %v1535
        %v1537 = vlaneseq
        %v1538 = vshrl.u32 %v1537, 7
        %v1539 = vsub.s32 %v1536, %v1538
        %v1540 = vrot.slane %v1532, %v1539
        %v1541 = vcombine.high %v1540, 0.0
        %v1543 = vunpack.c.l.s4 1934713408
        %v1544 = vunpack.c.0.s8 %v1543
        %v1545 = vlaneseq
        %v1546 = vshrl.u32 %v1545, 7
        %v1547 = vsub.s32 %v1544, %v1546
        %v1548 = vrot.slane %v1540, %v1547
        %v1550 = vunpack.c.l.s4 1934713408
        %v1551 = vunpack.c.0.s8 %v1550
        %v1552 = vlaneseq
        %v1553 = vshrl.u32 %v1552, 7
        %v1554 = vsub.s32 %v1551, %v1553
        %v1555 = vrot.slane %v1541, %v1554
        %v1556 = vcombine.high %v1548, 0.0
        %v1557 = vcombine.high %v1555, 0.0
        %1559 = vrot.lane.b32.xlu0 %v1556, 4
        %v1560 = vpop.permute.xlu0 %1559
        %1563 = vrot.lane.b32.xlu0 %v1555, 8
        %v1564 = vpop.permute.xlu0 %1563
        %1567 = vrot.lane.b32.xlu0 %v1557, 12
        %v1568 = vpop.permute.xlu0 %1567
        %v1570 = vsel %vm191, %v1548, %v1560
        %v1571 = vsel %vm193, %v1570, %v1564
        %v1572 = vsel %vm195, %v1571, %v1568
        %1574 = vrot.lane.b32.xlu0 %v984, 16
        %v1575 = vpop.permute.xlu0 %1574
        %1578 = vrot.lane.b32.xlu0 %v1024, 32
        %v1579 = vpop.permute.xlu0 %1578
        %1582 = vrot.lane.b32.xlu0 %v1064, 48
        %v1583 = vpop.permute.xlu0 %1582
        %1586 = vrot.lane.b32.xlu0 %v1107, 64
        %v1587 = vpop.permute.xlu0 %1586
        %1590 = vrot.lane.b32.xlu0 %v1150, 80
        %v1591 = vpop.permute.xlu0 %1590
        %1594 = vrot.lane.b32.xlu0 %v1193, 96
        %v1595 = vpop.permute.xlu0 %1594
        %1598 = vrot.lane.b32.xlu0 %v1236, 112
        %v1599 = vpop.permute.xlu0 %1598
        %1602 = vrot.lane.b32.xlu0 %v1320, 16
        %v1603 = vpop.permute.xlu0 %1602
        %1606 = vrot.lane.b32.xlu0 %v1362, 32
        %v1607 = vpop.permute.xlu0 %1606
        %1610 = vrot.lane.b32.xlu0 %v1404, 48
        %v1611 = vpop.permute.xlu0 %1610
        %1614 = vrot.lane.b32.xlu0 %v1446, 64
        %v1615 = vpop.permute.xlu0 %1614
        %1618 = vrot.lane.b32.xlu0 %v1488, 80
        %v1619 = vpop.permute.xlu0 %1618
        %1622 = vrot.lane.b32.xlu0 %v1530, 96
        %v1623 = vpop.permute.xlu0 %1622
        %1626 = vrot.lane.b32.xlu0 %v1572, 112
        %v1627 = vpop.permute.xlu0 %1626
        %v1629 = vsel %vm884, %v944, %v1575
        %v1630 = vsel %vm886, %v1629, %v1579
        %v1631 = vsel %vm888, %v1630, %v1583
        %v1632 = vsel %vm890, %v1631, %v1587
        %v1633 = vsel %vm892, %v1632, %v1591
        %v1634 = vsel %vm894, %v1633, %v1595
        %v1635 = vsel %vm896, %v1634, %v1599
        %v1636 = vsel %vm884, %v1278, %v1603
        %v1637 = vsel %vm886, %v1636, %v1607
        %v1638 = vsel %vm888, %v1637, %v1611
        %v1639 = vsel %vm890, %v1638, %v1615
        %v1640 = vsel %vm892, %v1639, %v1619
        %v1641 = vsel %vm894, %v1640, %v1623
        %v1642 = vsel %vm896, %v1641, %v1627
        %v1643 = vld [vmem:[%s134 + $0x8] sm:$0xf]
        %v1645 = vunpack.c.l.s4 1983009808
        %v1646 = vunpack.c.0.s8 %v1645
        %v1647 = vlaneseq
        %v1648 = vshrl.u32 %v1647, 7
        %v1649 = vsub.s32 %v1646, %v1648
        %v1650 = vrot.slane %v1643, %v1649
        %v1651 = vcombine.high %v1650, 0.0
        %v1653 = vunpack.c.l.s4 1934713408
        %v1654 = vunpack.c.0.s8 %v1653
        %v1655 = vlaneseq
        %v1656 = vshrl.u32 %v1655, 7
        %v1657 = vsub.s32 %v1654, %v1656
        %v1658 = vrot.slane %v1650, %v1657
        %v1660 = vunpack.c.l.s4 1934713408
        %v1661 = vunpack.c.0.s8 %v1660
        %v1662 = vlaneseq
        %v1663 = vshrl.u32 %v1662, 7
        %v1664 = vsub.s32 %v1661, %v1663
        %v1665 = vrot.slane %v1651, %v1664
        %v1666 = vcombine.high %v1658, 0.0
        %v1667 = vcombine.high %v1665, 0.0
        %1669 = vrot.lane.b32.xlu0 %v1666, 4
        %v1670 = vpop.permute.xlu0 %1669
        %1673 = vrot.lane.b32.xlu0 %v1665, 8
        %v1674 = vpop.permute.xlu0 %1673
        %1677 = vrot.lane.b32.xlu0 %v1667, 12
        %v1678 = vpop.permute.xlu0 %1677
        %v1680 = vsel %vm191, %v1658, %v1670
        %v1681 = vsel %vm193, %v1680, %v1674
        %v1682 = vsel %vm195, %v1681, %v1678
        %v1683 = vld [vmem:[%s197 + $0x8] sm:$0xf]
        %v1685 = vunpack.c.l.s4 1983009808
        %v1686 = vunpack.c.0.s8 %v1685
        %v1687 = vlaneseq
        %v1688 = vshrl.u32 %v1687, 7
        %v1689 = vsub.s32 %v1686, %v1688
        %v1690 = vrot.slane %v1683, %v1689
        %v1691 = vcombine.high %v1690, 0.0
        %v1693 = vunpack.c.l.s4 1934713408
        %v1694 = vunpack.c.0.s8 %v1693
        %v1695 = vlaneseq
        %v1696 = vshrl.u32 %v1695, 7
        %v1697 = vsub.s32 %v1694, %v1696
        %v1698 = vrot.slane %v1690, %v1697
        %v1700 = vunpack.c.l.s4 1934713408
        %v1701 = vunpack.c.0.s8 %v1700
        %v1702 = vlaneseq
        %v1703 = vshrl.u32 %v1702, 7
        %v1704 = vsub.s32 %v1701, %v1703
        %v1705 = vrot.slane %v1691, %v1704
        %v1706 = vcombine.high %v1698, 0.0
        %v1707 = vcombine.high %v1705, 0.0
        %1709 = vrot.lane.b32.xlu0 %v1706, 4
        %v1710 = vpop.permute.xlu0 %1709
        %1713 = vrot.lane.b32.xlu0 %v1705, 8
        %v1714 = vpop.permute.xlu0 %1713
        %1717 = vrot.lane.b32.xlu0 %v1707, 12
        %v1718 = vpop.permute.xlu0 %1717
        %v1720 = vsel %vm191, %v1698, %v1710
        %v1721 = vsel %vm193, %v1720, %v1714
        %v1722 = vsel %vm195, %v1721, %v1718
        %v1723 = vld [vmem:[%s238 + $0x8] sm:$0xf]
        %v1725 = vunpack.c.l.s4 1983009808
        %v1726 = vunpack.c.0.s8 %v1725
        %v1727 = vlaneseq
        %v1728 = vshrl.u32 %v1727, 7
        %v1729 = vsub.s32 %v1726, %v1728
        %v1730 = vrot.slane %v1723, %v1729
        %v1731 = vcombine.high %v1730, 0.0
        %v1733 = vunpack.c.l.s4 1934713408
        %v1734 = vunpack.c.0.s8 %v1733
        %v1735 = vlaneseq
        %v1736 = vshrl.u32 %v1735, 7
        %v1737 = vsub.s32 %v1734, %v1736
        %v1738 = vrot.slane %v1730, %v1737
        %v1740 = vunpack.c.l.s4 1934713408
        %v1741 = vunpack.c.0.s8 %v1740
        %v1742 = vlaneseq
        %v1743 = vshrl.u32 %v1742, 7
        %v1744 = vsub.s32 %v1741, %v1743
        %v1745 = vrot.slane %v1731, %v1744
        %v1746 = vcombine.high %v1738, 0.0
        %v1747 = vcombine.high %v1745, 0.0
        %1749 = vrot.lane.b32.xlu0 %v1746, 4
        %v1750 = vpop.permute.xlu0 %1749
        %1753 = vrot.lane.b32.xlu0 %v1745, 8
        %v1754 = vpop.permute.xlu0 %1753
        %1757 = vrot.lane.b32.xlu0 %v1747, 12
        %v1758 = vpop.permute.xlu0 %1757
        %v1760 = vsel %vm191, %v1738, %v1750
        %v1761 = vsel %vm193, %v1760, %v1754
        %v1762 = vsel %vm195, %v1761, %v1758
        %v1763 = vld [vmem:[%s279 + $0x8] sm:$0xf]
        %v1765 = vunpack.c.l.s4 1983009808
        %v1766 = vunpack.c.0.s8 %v1765
        %v1767 = vlaneseq
        %v1768 = vshrl.u32 %v1767, 7
        %v1769 = vsub.s32 %v1766, %v1768
        %v1770 = vrot.slane %v1763, %v1769
        %v1771 = vcombine.high %v1770, 0.0
        %v1773 = vunpack.c.l.s4 1934713408
        %v1774 = vunpack.c.0.s8 %v1773
        %v1775 = vlaneseq
        %v1776 = vshrl.u32 %v1775, 7
        %v1777 = vsub.s32 %v1774, %v1776
        %v1778 = vrot.slane %v1770, %v1777
        %v1780 = vunpack.c.l.s4 1934713408
        %v1781 = vunpack.c.0.s8 %v1780
        %v1782 = vlaneseq
        %v1783 = vshrl.u32 %v1782, 7
        %v1784 = vsub.s32 %v1781, %v1783
        %v1785 = vrot.slane %v1771, %v1784
        %v1786 = vcombine.high %v1778, 0.0
        %v1787 = vcombine.high %v1785, 0.0
        %1789 = vrot.lane.b32.xlu0 %v1786, 4
        %v1790 = vpop.permute.xlu0 %1789
        %1793 = vrot.lane.b32.xlu0 %v1785, 8
        %v1794 = vpop.permute.xlu0 %1793
        %1797 = vrot.lane.b32.xlu0 %v1787, 12
        %v1798 = vpop.permute.xlu0 %1797
        %v1800 = vsel %vm191, %v1778, %v1790
        %v1801 = vsel %vm193, %v1800, %v1794
        %v1802 = vsel %vm195, %v1801, %v1798
        %1804 = vrot.lane.b32.xlu0 %v1643, 124
        %v1805 = vpop.permute.xlu0 %1804
        %v1808 = vunpack.c.l.s4 1983009808
        %v1809 = vunpack.c.0.s8 %v1808
        %v1810 = vlaneseq
        %v1811 = vshrl.u32 %v1810, 7
        %v1812 = vsub.s32 %v1809, %v1811
        %v1813 = vrot.slane %v1805, %v1812
        %v1814 = vcombine.high %v1813, 0.0
        %v1816 = vunpack.c.l.s4 1934713408
        %v1817 = vunpack.c.0.s8 %v1816
        %v1818 = vlaneseq
        %v1819 = vshrl.u32 %v1818, 7
        %v1820 = vsub.s32 %v1817, %v1819
        %v1821 = vrot.slane %v1813, %v1820
        %v1823 = vunpack.c.l.s4 1934713408
        %v1824 = vunpack.c.0.s8 %v1823
        %v1825 = vlaneseq
        %v1826 = vshrl.u32 %v1825, 7
        %v1827 = vsub.s32 %v1824, %v1826
        %v1828 = vrot.slane %v1814, %v1827
        %v1829 = vcombine.high %v1821, 0.0
        %v1830 = vcombine.high %v1828, 0.0
        %1832 = vrot.lane.b32.xlu0 %v1829, 4
        %v1833 = vpop.permute.xlu0 %1832
        %1836 = vrot.lane.b32.xlu0 %v1828, 8
        %v1837 = vpop.permute.xlu0 %1836
        %1840 = vrot.lane.b32.xlu0 %v1830, 12
        %v1841 = vpop.permute.xlu0 %1840
        %v1843 = vsel %vm191, %v1821, %v1833
        %v1844 = vsel %vm193, %v1843, %v1837
        %v1845 = vsel %vm195, %v1844, %v1841
        %1847 = vrot.lane.b32.xlu0 %v1683, 124
        %v1848 = vpop.permute.xlu0 %1847
        %v1851 = vunpack.c.l.s4 1983009808
        %v1852 = vunpack.c.0.s8 %v1851
        %v1853 = vlaneseq
        %v1854 = vshrl.u32 %v1853, 7
        %v1855 = vsub.s32 %v1852, %v1854
        %v1856 = vrot.slane %v1848, %v1855
        %v1857 = vcombine.high %v1856, 0.0
        %v1859 = vunpack.c.l.s4 1934713408
        %v1860 = vunpack.c.0.s8 %v1859
        %v1861 = vlaneseq
        %v1862 = vshrl.u32 %v1861, 7
        %v1863 = vsub.s32 %v1860, %v1862
        %v1864 = vrot.slane %v1856, %v1863
        %v1866 = vunpack.c.l.s4 1934713408
        %v1867 = vunpack.c.0.s8 %v1866
        %v1868 = vlaneseq
        %v1869 = vshrl.u32 %v1868, 7
        %v1870 = vsub.s32 %v1867, %v1869
        %v1871 = vrot.slane %v1857, %v1870
        %v1872 = vcombine.high %v1864, 0.0
        %v1873 = vcombine.high %v1871, 0.0
        %1875 = vrot.lane.b32.xlu0 %v1872, 4
        %v1876 = vpop.permute.xlu0 %1875
        %1879 = vrot.lane.b32.xlu0 %v1871, 8
        %v1880 = vpop.permute.xlu0 %1879
        %1883 = vrot.lane.b32.xlu0 %v1873, 12
        %v1884 = vpop.permute.xlu0 %1883
        %v1886 = vsel %vm191, %v1864, %v1876
        %v1887 = vsel %vm193, %v1886, %v1880
        %v1888 = vsel %vm195, %v1887, %v1884
        %1890 = vrot.lane.b32.xlu0 %v1723, 124
        %v1891 = vpop.permute.xlu0 %1890
        %v1894 = vunpack.c.l.s4 1983009808
        %v1895 = vunpack.c.0.s8 %v1894
        %v1896 = vlaneseq
        %v1897 = vshrl.u32 %v1896, 7
        %v1898 = vsub.s32 %v1895, %v1897
        %v1899 = vrot.slane %v1891, %v1898
        %v1900 = vcombine.high %v1899, 0.0
        %v1902 = vunpack.c.l.s4 1934713408
        %v1903 = vunpack.c.0.s8 %v1902
        %v1904 = vlaneseq
        %v1905 = vshrl.u32 %v1904, 7
        %v1906 = vsub.s32 %v1903, %v1905
        %v1907 = vrot.slane %v1899, %v1906
        %v1909 = vunpack.c.l.s4 1934713408
        %v1910 = vunpack.c.0.s8 %v1909
        %v1911 = vlaneseq
        %v1912 = vshrl.u32 %v1911, 7
        %v1913 = vsub.s32 %v1910, %v1912
        %v1914 = vrot.slane %v1900, %v1913
        %v1915 = vcombine.high %v1907, 0.0
        %v1916 = vcombine.high %v1914, 0.0
        %1918 = vrot.lane.b32.xlu0 %v1915, 4
        %v1919 = vpop.permute.xlu0 %1918
        %1922 = vrot.lane.b32.xlu0 %v1914, 8
        %v1923 = vpop.permute.xlu0 %1922
        %1926 = vrot.lane.b32.xlu0 %v1916, 12
        %v1927 = vpop.permute.xlu0 %1926
        %v1929 = vsel %vm191, %v1907, %v1919
        %v1930 = vsel %vm193, %v1929, %v1923
        %v1931 = vsel %vm195, %v1930, %v1927
        %1933 = vrot.lane.b32.xlu0 %v1763, 124
        %v1934 = vpop.permute.xlu0 %1933
        %v1937 = vunpack.c.l.s4 1983009808
        %v1938 = vunpack.c.0.s8 %v1937
        %v1939 = vlaneseq
        %v1940 = vshrl.u32 %v1939, 7
        %v1941 = vsub.s32 %v1938, %v1940
        %v1942 = vrot.slane %v1934, %v1941
        %v1943 = vcombine.high %v1942, 0.0
        %v1945 = vunpack.c.l.s4 1934713408
        %v1946 = vunpack.c.0.s8 %v1945
        %v1947 = vlaneseq
        %v1948 = vshrl.u32 %v1947, 7
        %v1949 = vsub.s32 %v1946, %v1948
        %v1950 = vrot.slane %v1942, %v1949
        %v1952 = vunpack.c.l.s4 1934713408
        %v1953 = vunpack.c.0.s8 %v1952
        %v1954 = vlaneseq
        %v1955 = vshrl.u32 %v1954, 7
        %v1956 = vsub.s32 %v1953, %v1955
        %v1957 = vrot.slane %v1943, %v1956
        %v1958 = vcombine.high %v1950, 0.0
        %v1959 = vcombine.high %v1957, 0.0
        %1961 = vrot.lane.b32.xlu0 %v1958, 4
        %v1962 = vpop.permute.xlu0 %1961
        %1965 = vrot.lane.b32.xlu0 %v1957, 8
        %v1966 = vpop.permute.xlu0 %1965
        %1969 = vrot.lane.b32.xlu0 %v1959, 12
        %v1970 = vpop.permute.xlu0 %1969
        %v1972 = vsel %vm191, %v1950, %v1962
        %v1973 = vsel %vm193, %v1972, %v1966
        %v1974 = vsel %vm195, %v1973, %v1970
        %1975 = vrot.lane.b32.xlu0 %v1643, 120
        %v1976 = vpop.permute.xlu0 %1975
        %v1979 = vunpack.c.l.s4 1983009808
        %v1980 = vunpack.c.0.s8 %v1979
        %v1981 = vlaneseq
        %v1982 = vshrl.u32 %v1981, 7
        %v1983 = vsub.s32 %v1980, %v1982
        %v1984 = vrot.slane %v1976, %v1983
        %v1985 = vcombine.high %v1984, 0.0
        %v1987 = vunpack.c.l.s4 1934713408
        %v1988 = vunpack.c.0.s8 %v1987
        %v1989 = vlaneseq
        %v1990 = vshrl.u32 %v1989, 7
        %v1991 = vsub.s32 %v1988, %v1990
        %v1992 = vrot.slane %v1984, %v1991
        %v1994 = vunpack.c.l.s4 1934713408
        %v1995 = vunpack.c.0.s8 %v1994
        %v1996 = vlaneseq
        %v1997 = vshrl.u32 %v1996, 7
        %v1998 = vsub.s32 %v1995, %v1997
        %v1999 = vrot.slane %v1985, %v1998
        %v2000 = vcombine.high %v1992, 0.0
        %v2001 = vcombine.high %v1999, 0.0
        %2003 = vrot.lane.b32.xlu0 %v2000, 4
        %v2004 = vpop.permute.xlu0 %2003
        %2007 = vrot.lane.b32.xlu0 %v1999, 8
        %v2008 = vpop.permute.xlu0 %2007
        %2011 = vrot.lane.b32.xlu0 %v2001, 12
        %v2012 = vpop.permute.xlu0 %2011
        %v2014 = vsel %vm191, %v1992, %v2004
        %v2015 = vsel %vm193, %v2014, %v2008
        %v2016 = vsel %vm195, %v2015, %v2012
        %2017 = vrot.lane.b32.xlu0 %v1683, 120
        %v2018 = vpop.permute.xlu0 %2017
        %v2021 = vunpack.c.l.s4 1983009808
        %v2022 = vunpack.c.0.s8 %v2021
        %v2023 = vlaneseq
        %v2024 = vshrl.u32 %v2023, 7
        %v2025 = vsub.s32 %v2022, %v2024
        %v2026 = vrot.slane %v2018, %v2025
        %v2027 = vcombine.high %v2026, 0.0
        %v2029 = vunpack.c.l.s4 1934713408
        %v2030 = vunpack.c.0.s8 %v2029
        %v2031 = vlaneseq
        %v2032 = vshrl.u32 %v2031, 7
        %v2033 = vsub.s32 %v2030, %v2032
        %v2034 = vrot.slane %v2026, %v2033
        %v2036 = vunpack.c.l.s4 1934713408
        %v2037 = vunpack.c.0.s8 %v2036
        %v2038 = vlaneseq
        %v2039 = vshrl.u32 %v2038, 7
        %v2040 = vsub.s32 %v2037, %v2039
        %v2041 = vrot.slane %v2027, %v2040
        %v2042 = vcombine.high %v2034, 0.0
        %v2043 = vcombine.high %v2041, 0.0
        %2045 = vrot.lane.b32.xlu0 %v2042, 4
        %v2046 = vpop.permute.xlu0 %2045
        %2049 = vrot.lane.b32.xlu0 %v2041, 8
        %v2050 = vpop.permute.xlu0 %2049
        %2053 = vrot.lane.b32.xlu0 %v2043, 12
        %v2054 = vpop.permute.xlu0 %2053
        %v2056 = vsel %vm191, %v2034, %v2046
        %v2057 = vsel %vm193, %v2056, %v2050
        %v2058 = vsel %vm195, %v2057, %v2054
        %2059 = vrot.lane.b32.xlu0 %v1723, 120
        %v2060 = vpop.permute.xlu0 %2059
        %v2063 = vunpack.c.l.s4 1983009808
        %v2064 = vunpack.c.0.s8 %v2063
        %v2065 = vlaneseq
        %v2066 = vshrl.u32 %v2065, 7
        %v2067 = vsub.s32 %v2064, %v2066
        %v2068 = vrot.slane %v2060, %v2067
        %v2069 = vcombine.high %v2068, 0.0
        %v2071 = vunpack.c.l.s4 1934713408
        %v2072 = vunpack.c.0.s8 %v2071
        %v2073 = vlaneseq
        %v2074 = vshrl.u32 %v2073, 7
        %v2075 = vsub.s32 %v2072, %v2074
        %v2076 = vrot.slane %v2068, %v2075
        %v2078 = vunpack.c.l.s4 1934713408
        %v2079 = vunpack.c.0.s8 %v2078
        %v2080 = vlaneseq
        %v2081 = vshrl.u32 %v2080, 7
        %v2082 = vsub.s32 %v2079, %v2081
        %v2083 = vrot.slane %v2069, %v2082
        %v2084 = vcombine.high %v2076, 0.0
        %v2085 = vcombine.high %v2083, 0.0
        %2087 = vrot.lane.b32.xlu0 %v2084, 4
        %v2088 = vpop.permute.xlu0 %2087
        %2091 = vrot.lane.b32.xlu0 %v2083, 8
        %v2092 = vpop.permute.xlu0 %2091
        %2095 = vrot.lane.b32.xlu0 %v2085, 12
        %v2096 = vpop.permute.xlu0 %2095
        %v2098 = vsel %vm191, %v2076, %v2088
        %v2099 = vsel %vm193, %v2098, %v2092
        %v2100 = vsel %vm195, %v2099, %v2096
        %2101 = vrot.lane.b32.xlu0 %v1763, 120
        %v2102 = vpop.permute.xlu0 %2101
        %v2105 = vunpack.c.l.s4 1983009808
        %v2106 = vunpack.c.0.s8 %v2105
        %v2107 = vlaneseq
        %v2108 = vshrl.u32 %v2107, 7
        %v2109 = vsub.s32 %v2106, %v2108
        %v2110 = vrot.slane %v2102, %v2109
        %v2111 = vcombine.high %v2110, 0.0
        %v2113 = vunpack.c.l.s4 1934713408
        %v2114 = vunpack.c.0.s8 %v2113
        %v2115 = vlaneseq
        %v2116 = vshrl.u32 %v2115, 7
        %v2117 = vsub.s32 %v2114, %v2116
        %v2118 = vrot.slane %v2110, %v2117
        %v2120 = vunpack.c.l.s4 1934713408
        %v2121 = vunpack.c.0.s8 %v2120
        %v2122 = vlaneseq
        %v2123 = vshrl.u32 %v2122, 7
        %v2124 = vsub.s32 %v2121, %v2123
        %v2125 = vrot.slane %v2111, %v2124
        %v2126 = vcombine.high %v2118, 0.0
        %v2127 = vcombine.high %v2125, 0.0
        %2129 = vrot.lane.b32.xlu0 %v2126, 4
        %v2130 = vpop.permute.xlu0 %2129
        %2133 = vrot.lane.b32.xlu0 %v2125, 8
        %v2134 = vpop.permute.xlu0 %2133
        %2137 = vrot.lane.b32.xlu0 %v2127, 12
        %v2138 = vpop.permute.xlu0 %2137
        %v2140 = vsel %vm191, %v2118, %v2130
        %v2141 = vsel %vm193, %v2140, %v2134
        %v2142 = vsel %vm195, %v2141, %v2138
        %2143 = vrot.lane.b32.xlu0 %v1643, 116
        %v2144 = vpop.permute.xlu0 %2143
        %v2147 = vunpack.c.l.s4 1983009808
        %v2148 = vunpack.c.0.s8 %v2147
        %v2149 = vlaneseq
        %v2150 = vshrl.u32 %v2149, 7
        %v2151 = vsub.s32 %v2148, %v2150
        %v2152 = vrot.slane %v2144, %v2151
        %v2153 = vcombine.high %v2152, 0.0
        %v2155 = vunpack.c.l.s4 1934713408
        %v2156 = vunpack.c.0.s8 %v2155
        %v2157 = vlaneseq
        %v2158 = vshrl.u32 %v2157, 7
        %v2159 = vsub.s32 %v2156, %v2158
        %v2160 = vrot.slane %v2152, %v2159
        %v2162 = vunpack.c.l.s4 1934713408
        %v2163 = vunpack.c.0.s8 %v2162
        %v2164 = vlaneseq
        %v2165 = vshrl.u32 %v2164, 7
        %v2166 = vsub.s32 %v2163, %v2165
        %v2167 = vrot.slane %v2153, %v2166
        %v2168 = vcombine.high %v2160, 0.0
        %v2169 = vcombine.high %v2167, 0.0
        %2171 = vrot.lane.b32.xlu0 %v2168, 4
        %v2172 = vpop.permute.xlu0 %2171
        %2175 = vrot.lane.b32.xlu0 %v2167, 8
        %v2176 = vpop.permute.xlu0 %2175
        %2179 = vrot.lane.b32.xlu0 %v2169, 12
        %v2180 = vpop.permute.xlu0 %2179
        %v2182 = vsel %vm191, %v2160, %v2172
        %v2183 = vsel %vm193, %v2182, %v2176
        %v2184 = vsel %vm195, %v2183, %v2180
        %2185 = vrot.lane.b32.xlu0 %v1683, 116
        %v2186 = vpop.permute.xlu0 %2185
        %v2189 = vunpack.c.l.s4 1983009808
        %v2190 = vunpack.c.0.s8 %v2189
        %v2191 = vlaneseq
        %v2192 = vshrl.u32 %v2191, 7
        %v2193 = vsub.s32 %v2190, %v2192
        %v2194 = vrot.slane %v2186, %v2193
        %v2195 = vcombine.high %v2194, 0.0
        %v2197 = vunpack.c.l.s4 1934713408
        %v2198 = vunpack.c.0.s8 %v2197
        %v2199 = vlaneseq
        %v2200 = vshrl.u32 %v2199, 7
        %v2201 = vsub.s32 %v2198, %v2200
        %v2202 = vrot.slane %v2194, %v2201
        %v2204 = vunpack.c.l.s4 1934713408
        %v2205 = vunpack.c.0.s8 %v2204
        %v2206 = vlaneseq
        %v2207 = vshrl.u32 %v2206, 7
        %v2208 = vsub.s32 %v2205, %v2207
        %v2209 = vrot.slane %v2195, %v2208
        %v2210 = vcombine.high %v2202, 0.0
        %v2211 = vcombine.high %v2209, 0.0
        %2213 = vrot.lane.b32.xlu0 %v2210, 4
        %v2214 = vpop.permute.xlu0 %2213
        %2217 = vrot.lane.b32.xlu0 %v2209, 8
        %v2218 = vpop.permute.xlu0 %2217
        %2221 = vrot.lane.b32.xlu0 %v2211, 12
        %v2222 = vpop.permute.xlu0 %2221
        %v2224 = vsel %vm191, %v2202, %v2214
        %v2225 = vsel %vm193, %v2224, %v2218
        %v2226 = vsel %vm195, %v2225, %v2222
        %2227 = vrot.lane.b32.xlu0 %v1723, 116
        %v2228 = vpop.permute.xlu0 %2227
        %v2231 = vunpack.c.l.s4 1983009808
        %v2232 = vunpack.c.0.s8 %v2231
        %v2233 = vlaneseq
        %v2234 = vshrl.u32 %v2233, 7
        %v2235 = vsub.s32 %v2232, %v2234
        %v2236 = vrot.slane %v2228, %v2235
        %v2237 = vcombine.high %v2236, 0.0
        %v2239 = vunpack.c.l.s4 1934713408
        %v2240 = vunpack.c.0.s8 %v2239
        %v2241 = vlaneseq
        %v2242 = vshrl.u32 %v2241, 7
        %v2243 = vsub.s32 %v2240, %v2242
        %v2244 = vrot.slane %v2236, %v2243
        %v2246 = vunpack.c.l.s4 1934713408
        %v2247 = vunpack.c.0.s8 %v2246
        %v2248 = vlaneseq
        %v2249 = vshrl.u32 %v2248, 7
        %v2250 = vsub.s32 %v2247, %v2249
        %v2251 = vrot.slane %v2237, %v2250
        %v2252 = vcombine.high %v2244, 0.0
        %v2253 = vcombine.high %v2251, 0.0
        %2255 = vrot.lane.b32.xlu0 %v2252, 4
        %v2256 = vpop.permute.xlu0 %2255
        %2259 = vrot.lane.b32.xlu0 %v2251, 8
        %v2260 = vpop.permute.xlu0 %2259
        %2263 = vrot.lane.b32.xlu0 %v2253, 12
        %v2264 = vpop.permute.xlu0 %2263
        %v2266 = vsel %vm191, %v2244, %v2256
        %v2267 = vsel %vm193, %v2266, %v2260
        %v2268 = vsel %vm195, %v2267, %v2264
        %2269 = vrot.lane.b32.xlu0 %v1763, 116
        %v2270 = vpop.permute.xlu0 %2269
        %v2273 = vunpack.c.l.s4 1983009808
        %v2274 = vunpack.c.0.s8 %v2273
        %v2275 = vlaneseq
        %v2276 = vshrl.u32 %v2275, 7
        %v2277 = vsub.s32 %v2274, %v2276
        %v2278 = vrot.slane %v2270, %v2277
        %v2279 = vcombine.high %v2278, 0.0
        %v2281 = vunpack.c.l.s4 1934713408
        %v2282 = vunpack.c.0.s8 %v2281
        %v2283 = vlaneseq
        %v2284 = vshrl.u32 %v2283, 7
        %v2285 = vsub.s32 %v2282, %v2284
        %v2286 = vrot.slane %v2278, %v2285
        %v2288 = vunpack.c.l.s4 1934713408
        %v2289 = vunpack.c.0.s8 %v2288
        %v2290 = vlaneseq
        %v2291 = vshrl.u32 %v2290, 7
        %v2292 = vsub.s32 %v2289, %v2291
        %v2293 = vrot.slane %v2279, %v2292
        %v2294 = vcombine.high %v2286, 0.0
        %v2295 = vcombine.high %v2293, 0.0
        %2297 = vrot.lane.b32.xlu0 %v2294, 4
        %v2298 = vpop.permute.xlu0 %2297
        %2301 = vrot.lane.b32.xlu0 %v2293, 8
        %v2302 = vpop.permute.xlu0 %2301
        %2305 = vrot.lane.b32.xlu0 %v2295, 12
        %v2306 = vpop.permute.xlu0 %2305
        %v2308 = vsel %vm191, %v2286, %v2298
        %v2309 = vsel %vm193, %v2308, %v2302
        %v2310 = vsel %vm195, %v2309, %v2306
        %2312 = vrot.lane.b32.xlu0 %v1722, 16
        %v2313 = vpop.permute.xlu0 %2312
        %2316 = vrot.lane.b32.xlu0 %v1762, 32
        %v2317 = vpop.permute.xlu0 %2316
        %2320 = vrot.lane.b32.xlu0 %v1802, 48
        %v2321 = vpop.permute.xlu0 %2320
        %2324 = vrot.lane.b32.xlu0 %v1845, 64
        %v2325 = vpop.permute.xlu0 %2324
        %2328 = vrot.lane.b32.xlu0 %v1888, 80
        %v2329 = vpop.permute.xlu0 %2328
        %2332 = vrot.lane.b32.xlu0 %v1931, 96
        %v2333 = vpop.permute.xlu0 %2332
        %2336 = vrot.lane.b32.xlu0 %v1974, 112
        %v2337 = vpop.permute.xlu0 %2336
        %2340 = vrot.lane.b32.xlu0 %v2058, 16
        %v2341 = vpop.permute.xlu0 %2340
        %2344 = vrot.lane.b32.xlu0 %v2100, 32
        %v2345 = vpop.permute.xlu0 %2344
        %2348 = vrot.lane.b32.xlu0 %v2142, 48
        %v2349 = vpop.permute.xlu0 %2348
        %2352 = vrot.lane.b32.xlu0 %v2184, 64
        %v2353 = vpop.permute.xlu0 %2352
        %2356 = vrot.lane.b32.xlu0 %v2226, 80
        %v2357 = vpop.permute.xlu0 %2356
        %2360 = vrot.lane.b32.xlu0 %v2268, 96
        %v2361 = vpop.permute.xlu0 %2360
        %2364 = vrot.lane.b32.xlu0 %v2310, 112
        %v2365 = vpop.permute.xlu0 %2364
        %v2367 = vsel %vm884, %v1682, %v2313
        %v2368 = vsel %vm886, %v2367, %v2317
        %v2369 = vsel %vm888, %v2368, %v2321
        %v2370 = vsel %vm890, %v2369, %v2325
        %v2371 = vsel %vm892, %v2370, %v2329
        %v2372 = vsel %vm894, %v2371, %v2333
        %v2373 = vsel %vm896, %v2372, %v2337
        %v2374 = vsel %vm884, %v2016, %v2341
        %v2375 = vsel %vm886, %v2374, %v2345
        %v2376 = vsel %vm888, %v2375, %v2349
        %v2377 = vsel %vm890, %v2376, %v2353
        %v2378 = vsel %vm892, %v2377, %v2357
        %v2379 = vsel %vm894, %v2378, %v2361
        %v2380 = vsel %vm896, %v2379, %v2365
        %v2381 = vld [vmem:[%s134 + $0xc] sm:$0xf]
        %v2383 = vunpack.c.l.s4 1983009808
        %v2384 = vunpack.c.0.s8 %v2383
        %v2385 = vlaneseq
        %v2386 = vshrl.u32 %v2385, 7
        %v2387 = vsub.s32 %v2384, %v2386
        %v2388 = vrot.slane %v2381, %v2387
        %v2389 = vcombine.high %v2388, 0.0
        %v2391 = vunpack.c.l.s4 1934713408
        %v2392 = vunpack.c.0.s8 %v2391
        %v2393 = vlaneseq
        %v2394 = vshrl.u32 %v2393, 7
        %v2395 = vsub.s32 %v2392, %v2394
        %v2396 = vrot.slane %v2388, %v2395
        %v2398 = vunpack.c.l.s4 1934713408
        %v2399 = vunpack.c.0.s8 %v2398
        %v2400 = vlaneseq
        %v2401 = vshrl.u32 %v2400, 7
        %v2402 = vsub.s32 %v2399, %v2401
        %v2403 = vrot.slane %v2389, %v2402
        %v2404 = vcombine.high %v2396, 0.0
        %v2405 = vcombine.high %v2403, 0.0
        %2407 = vrot.lane.b32.xlu0 %v2404, 4
        %v2408 = vpop.permute.xlu0 %2407
        %2411 = vrot.lane.b32.xlu0 %v2403, 8
        %v2412 = vpop.permute.xlu0 %2411
        %2415 = vrot.lane.b32.xlu0 %v2405, 12
        %v2416 = vpop.permute.xlu0 %2415
        %v2418 = vsel %vm191, %v2396, %v2408
        %v2419 = vsel %vm193, %v2418, %v2412
        %v2420 = vsel %vm195, %v2419, %v2416
        %v2421 = vld [vmem:[%s197 + $0xc] sm:$0xf]
        %v2423 = vunpack.c.l.s4 1983009808
        %v2424 = vunpack.c.0.s8 %v2423
        %v2425 = vlaneseq
        %v2426 = vshrl.u32 %v2425, 7
        %v2427 = vsub.s32 %v2424, %v2426
        %v2428 = vrot.slane %v2421, %v2427
        %v2429 = vcombine.high %v2428, 0.0
        %v2431 = vunpack.c.l.s4 1934713408
        %v2432 = vunpack.c.0.s8 %v2431
        %v2433 = vlaneseq
        %v2434 = vshrl.u32 %v2433, 7
        %v2435 = vsub.s32 %v2432, %v2434
        %v2436 = vrot.slane %v2428, %v2435
        %v2438 = vunpack.c.l.s4 1934713408
        %v2439 = vunpack.c.0.s8 %v2438
        %v2440 = vlaneseq
        %v2441 = vshrl.u32 %v2440, 7
        %v2442 = vsub.s32 %v2439, %v2441
        %v2443 = vrot.slane %v2429, %v2442
        %v2444 = vcombine.high %v2436, 0.0
        %v2445 = vcombine.high %v2443, 0.0
        %2447 = vrot.lane.b32.xlu0 %v2444, 4
        %v2448 = vpop.permute.xlu0 %2447
        %2451 = vrot.lane.b32.xlu0 %v2443, 8
        %v2452 = vpop.permute.xlu0 %2451
        %2455 = vrot.lane.b32.xlu0 %v2445, 12
        %v2456 = vpop.permute.xlu0 %2455
        %v2458 = vsel %vm191, %v2436, %v2448
        %v2459 = vsel %vm193, %v2458, %v2452
        %v2460 = vsel %vm195, %v2459, %v2456
        %v2461 = vld [vmem:[%s238 + $0xc] sm:$0xf]
        %v2463 = vunpack.c.l.s4 1983009808
        %v2464 = vunpack.c.0.s8 %v2463
        %v2465 = vlaneseq
        %v2466 = vshrl.u32 %v2465, 7
        %v2467 = vsub.s32 %v2464, %v2466
        %v2468 = vrot.slane %v2461, %v2467
        %v2469 = vcombine.high %v2468, 0.0
        %v2471 = vunpack.c.l.s4 1934713408
        %v2472 = vunpack.c.0.s8 %v2471
        %v2473 = vlaneseq
        %v2474 = vshrl.u32 %v2473, 7
        %v2475 = vsub.s32 %v2472, %v2474
        %v2476 = vrot.slane %v2468, %v2475
        %v2478 = vunpack.c.l.s4 1934713408
        %v2479 = vunpack.c.0.s8 %v2478
        %v2480 = vlaneseq
        %v2481 = vshrl.u32 %v2480, 7
        %v2482 = vsub.s32 %v2479, %v2481
        %v2483 = vrot.slane %v2469, %v2482
        %v2484 = vcombine.high %v2476, 0.0
        %v2485 = vcombine.high %v2483, 0.0
        %2487 = vrot.lane.b32.xlu0 %v2484, 4
        %v2488 = vpop.permute.xlu0 %2487
        %2491 = vrot.lane.b32.xlu0 %v2483, 8
        %v2492 = vpop.permute.xlu0 %2491
        %2495 = vrot.lane.b32.xlu0 %v2485, 12
        %v2496 = vpop.permute.xlu0 %2495
        %v2498 = vsel %vm191, %v2476, %v2488
        %v2499 = vsel %vm193, %v2498, %v2492
        %v2500 = vsel %vm195, %v2499, %v2496
        %v2501 = vld [vmem:[%s279 + $0xc] sm:$0xf]
        %v2503 = vunpack.c.l.s4 1983009808
        %v2504 = vunpack.c.0.s8 %v2503
        %v2505 = vlaneseq
        %v2506 = vshrl.u32 %v2505, 7
        %v2507 = vsub.s32 %v2504, %v2506
        %v2508 = vrot.slane %v2501, %v2507
        %v2509 = vcombine.high %v2508, 0.0
        %v2511 = vunpack.c.l.s4 1934713408
        %v2512 = vunpack.c.0.s8 %v2511
        %v2513 = vlaneseq
        %v2514 = vshrl.u32 %v2513, 7
        %v2515 = vsub.s32 %v2512, %v2514
        %v2516 = vrot.slane %v2508, %v2515
        %v2518 = vunpack.c.l.s4 1934713408
        %v2519 = vunpack.c.0.s8 %v2518
        %v2520 = vlaneseq
        %v2521 = vshrl.u32 %v2520, 7
        %v2522 = vsub.s32 %v2519, %v2521
        %v2523 = vrot.slane %v2509, %v2522
        %v2524 = vcombine.high %v2516, 0.0
        %v2525 = vcombine.high %v2523, 0.0
        %2527 = vrot.lane.b32.xlu0 %v2524, 4
        %v2528 = vpop.permute.xlu0 %2527
        %2531 = vrot.lane.b32.xlu0 %v2523, 8
        %v2532 = vpop.permute.xlu0 %2531
        %2535 = vrot.lane.b32.xlu0 %v2525, 12
        %v2536 = vpop.permute.xlu0 %2535
        %v2538 = vsel %vm191, %v2516, %v2528
        %v2539 = vsel %vm193, %v2538, %v2532
        %v2540 = vsel %vm195, %v2539, %v2536
        %2542 = vrot.lane.b32.xlu0 %v2381, 124
        %v2543 = vpop.permute.xlu0 %2542
        %v2546 = vunpack.c.l.s4 1983009808
        %v2547 = vunpack.c.0.s8 %v2546
        %v2548 = vlaneseq
        %v2549 = vshrl.u32 %v2548, 7
        %v2550 = vsub.s32 %v2547, %v2549
        %v2551 = vrot.slane %v2543, %v2550
        %v2552 = vcombine.high %v2551, 0.0
        %v2554 = vunpack.c.l.s4 1934713408
        %v2555 = vunpack.c.0.s8 %v2554
        %v2556 = vlaneseq
        %v2557 = vshrl.u32 %v2556, 7
        %v2558 = vsub.s32 %v2555, %v2557
        %v2559 = vrot.slane %v2551, %v2558
        %v2561 = vunpack.c.l.s4 1934713408
        %v2562 = vunpack.c.0.s8 %v2561
        %v2563 = vlaneseq
        %v2564 = vshrl.u32 %v2563, 7
        %v2565 = vsub.s32 %v2562, %v2564
        %v2566 = vrot.slane %v2552, %v2565
        %v2567 = vcombine.high %v2559, 0.0
        %v2568 = vcombine.high %v2566, 0.0
        %2570 = vrot.lane.b32.xlu0 %v2567, 4
        %v2571 = vpop.permute.xlu0 %2570
        %2574 = vrot.lane.b32.xlu0 %v2566, 8
        %v2575 = vpop.permute.xlu0 %2574
        %2578 = vrot.lane.b32.xlu0 %v2568, 12
        %v2579 = vpop.permute.xlu0 %2578
        %v2581 = vsel %vm191, %v2559, %v2571
        %v2582 = vsel %vm193, %v2581, %v2575
        %v2583 = vsel %vm195, %v2582, %v2579
        %2585 = vrot.lane.b32.xlu0 %v2421, 124
        %v2586 = vpop.permute.xlu0 %2585
        %v2589 = vunpack.c.l.s4 1983009808
        %v2590 = vunpack.c.0.s8 %v2589
        %v2591 = vlaneseq
        %v2592 = vshrl.u32 %v2591, 7
        %v2593 = vsub.s32 %v2590, %v2592
        %v2594 = vrot.slane %v2586, %v2593
        %v2595 = vcombine.high %v2594, 0.0
        %v2597 = vunpack.c.l.s4 1934713408
        %v2598 = vunpack.c.0.s8 %v2597
        %v2599 = vlaneseq
        %v2600 = vshrl.u32 %v2599, 7
        %v2601 = vsub.s32 %v2598, %v2600
        %v2602 = vrot.slane %v2594, %v2601
        %v2604 = vunpack.c.l.s4 1934713408
        %v2605 = vunpack.c.0.s8 %v2604
        %v2606 = vlaneseq
        %v2607 = vshrl.u32 %v2606, 7
        %v2608 = vsub.s32 %v2605, %v2607
        %v2609 = vrot.slane %v2595, %v2608
        %v2610 = vcombine.high %v2602, 0.0
        %v2611 = vcombine.high %v2609, 0.0
        %2613 = vrot.lane.b32.xlu0 %v2610, 4
        %v2614 = vpop.permute.xlu0 %2613
        %2617 = vrot.lane.b32.xlu0 %v2609, 8
        %v2618 = vpop.permute.xlu0 %2617
        %2621 = vrot.lane.b32.xlu0 %v2611, 12
        %v2622 = vpop.permute.xlu0 %2621
        %v2624 = vsel %vm191, %v2602, %v2614
        %v2625 = vsel %vm193, %v2624, %v2618
        %v2626 = vsel %vm195, %v2625, %v2622
        %2628 = vrot.lane.b32.xlu0 %v2461, 124
        %v2629 = vpop.permute.xlu0 %2628
        %v2632 = vunpack.c.l.s4 1983009808
        %v2633 = vunpack.c.0.s8 %v2632
        %v2634 = vlaneseq
        %v2635 = vshrl.u32 %v2634, 7
        %v2636 = vsub.s32 %v2633, %v2635
        %v2637 = vrot.slane %v2629, %v2636
        %v2638 = vcombine.high %v2637, 0.0
        %v2640 = vunpack.c.l.s4 1934713408
        %v2641 = vunpack.c.0.s8 %v2640
        %v2642 = vlaneseq
        %v2643 = vshrl.u32 %v2642, 7
        %v2644 = vsub.s32 %v2641, %v2643
        %v2645 = vrot.slane %v2637, %v2644
        %v2647 = vunpack.c.l.s4 1934713408
        %v2648 = vunpack.c.0.s8 %v2647
        %v2649 = vlaneseq
        %v2650 = vshrl.u32 %v2649, 7
        %v2651 = vsub.s32 %v2648, %v2650
        %v2652 = vrot.slane %v2638, %v2651
        %v2653 = vcombine.high %v2645, 0.0
        %v2654 = vcombine.high %v2652, 0.0
        %2656 = vrot.lane.b32.xlu0 %v2653, 4
        %v2657 = vpop.permute.xlu0 %2656
        %2660 = vrot.lane.b32.xlu0 %v2652, 8
        %v2661 = vpop.permute.xlu0 %2660
        %2664 = vrot.lane.b32.xlu0 %v2654, 12
        %v2665 = vpop.permute.xlu0 %2664
        %v2667 = vsel %vm191, %v2645, %v2657
        %v2668 = vsel %vm193, %v2667, %v2661
        %v2669 = vsel %vm195, %v2668, %v2665
        %2671 = vrot.lane.b32.xlu0 %v2501, 124
        %v2672 = vpop.permute.xlu0 %2671
        %v2675 = vunpack.c.l.s4 1983009808
        %v2676 = vunpack.c.0.s8 %v2675
        %v2677 = vlaneseq
        %v2678 = vshrl.u32 %v2677, 7
        %v2679 = vsub.s32 %v2676, %v2678
        %v2680 = vrot.slane %v2672, %v2679
        %v2681 = vcombine.high %v2680, 0.0
        %v2683 = vunpack.c.l.s4 1934713408
        %v2684 = vunpack.c.0.s8 %v2683
        %v2685 = vlaneseq
        %v2686 = vshrl.u32 %v2685, 7
        %v2687 = vsub.s32 %v2684, %v2686
        %v2688 = vrot.slane %v2680, %v2687
        %v2690 = vunpack.c.l.s4 1934713408
        %v2691 = vunpack.c.0.s8 %v2690
        %v2692 = vlaneseq
        %v2693 = vshrl.u32 %v2692, 7
        %v2694 = vsub.s32 %v2691, %v2693
        %v2695 = vrot.slane %v2681, %v2694
        %v2696 = vcombine.high %v2688, 0.0
        %v2697 = vcombine.high %v2695, 0.0
        %2699 = vrot.lane.b32.xlu0 %v2696, 4
        %v2700 = vpop.permute.xlu0 %2699
        %2703 = vrot.lane.b32.xlu0 %v2695, 8
        %v2704 = vpop.permute.xlu0 %2703
        %2707 = vrot.lane.b32.xlu0 %v2697, 12
        %v2708 = vpop.permute.xlu0 %2707
        %v2710 = vsel %vm191, %v2688, %v2700
        %v2711 = vsel %vm193, %v2710, %v2704
        %v2712 = vsel %vm195, %v2711, %v2708
        %2713 = vrot.lane.b32.xlu0 %v2381, 120
        %v2714 = vpop.permute.xlu0 %2713
        %v2717 = vunpack.c.l.s4 1983009808
        %v2718 = vunpack.c.0.s8 %v2717
        %v2719 = vlaneseq
        %v2720 = vshrl.u32 %v2719, 7
        %v2721 = vsub.s32 %v2718, %v2720
        %v2722 = vrot.slane %v2714, %v2721
        %v2723 = vcombine.high %v2722, 0.0
        %v2725 = vunpack.c.l.s4 1934713408
        %v2726 = vunpack.c.0.s8 %v2725
        %v2727 = vlaneseq
        %v2728 = vshrl.u32 %v2727, 7
        %v2729 = vsub.s32 %v2726, %v2728
        %v2730 = vrot.slane %v2722, %v2729
        %v2732 = vunpack.c.l.s4 1934713408
        %v2733 = vunpack.c.0.s8 %v2732
        %v2734 = vlaneseq
        %v2735 = vshrl.u32 %v2734, 7
        %v2736 = vsub.s32 %v2733, %v2735
        %v2737 = vrot.slane %v2723, %v2736
        %v2738 = vcombine.high %v2730, 0.0
        %v2739 = vcombine.high %v2737, 0.0
        %2741 = vrot.lane.b32.xlu0 %v2738, 4
        %v2742 = vpop.permute.xlu0 %2741
        %2745 = vrot.lane.b32.xlu0 %v2737, 8
        %v2746 = vpop.permute.xlu0 %2745
        %2749 = vrot.lane.b32.xlu0 %v2739, 12
        %v2750 = vpop.permute.xlu0 %2749
        %v2752 = vsel %vm191, %v2730, %v2742
        %v2753 = vsel %vm193, %v2752, %v2746
        %v2754 = vsel %vm195, %v2753, %v2750
        %2755 = vrot.lane.b32.xlu0 %v2421, 120
        %v2756 = vpop.permute.xlu0 %2755
        %v2759 = vunpack.c.l.s4 1983009808
        %v2760 = vunpack.c.0.s8 %v2759
        %v2761 = vlaneseq
        %v2762 = vshrl.u32 %v2761, 7
        %v2763 = vsub.s32 %v2760, %v2762
        %v2764 = vrot.slane %v2756, %v2763
        %v2765 = vcombine.high %v2764, 0.0
        %v2767 = vunpack.c.l.s4 1934713408
        %v2768 = vunpack.c.0.s8 %v2767
        %v2769 = vlaneseq
        %v2770 = vshrl.u32 %v2769, 7
        %v2771 = vsub.s32 %v2768, %v2770
        %v2772 = vrot.slane %v2764, %v2771
        %v2774 = vunpack.c.l.s4 1934713408
        %v2775 = vunpack.c.0.s8 %v2774
        %v2776 = vlaneseq
        %v2777 = vshrl.u32 %v2776, 7
        %v2778 = vsub.s32 %v2775, %v2777
        %v2779 = vrot.slane %v2765, %v2778
        %v2780 = vcombine.high %v2772, 0.0
        %v2781 = vcombine.high %v2779, 0.0
        %2783 = vrot.lane.b32.xlu0 %v2780, 4
        %v2784 = vpop.permute.xlu0 %2783
        %2787 = vrot.lane.b32.xlu0 %v2779, 8
        %v2788 = vpop.permute.xlu0 %2787
        %2791 = vrot.lane.b32.xlu0 %v2781, 12
        %v2792 = vpop.permute.xlu0 %2791
        %v2794 = vsel %vm191, %v2772, %v2784
        %v2795 = vsel %vm193, %v2794, %v2788
        %v2796 = vsel %vm195, %v2795, %v2792
        %2797 = vrot.lane.b32.xlu0 %v2461, 120
        %v2798 = vpop.permute.xlu0 %2797
        %v2801 = vunpack.c.l.s4 1983009808
        %v2802 = vunpack.c.0.s8 %v2801
        %v2803 = vlaneseq
        %v2804 = vshrl.u32 %v2803, 7
        %v2805 = vsub.s32 %v2802, %v2804
        %v2806 = vrot.slane %v2798, %v2805
        %v2807 = vcombine.high %v2806, 0.0
        %v2809 = vunpack.c.l.s4 1934713408
        %v2810 = vunpack.c.0.s8 %v2809
        %v2811 = vlaneseq
        %v2812 = vshrl.u32 %v2811, 7
        %v2813 = vsub.s32 %v2810, %v2812
        %v2814 = vrot.slane %v2806, %v2813
        %v2816 = vunpack.c.l.s4 1934713408
        %v2817 = vunpack.c.0.s8 %v2816
        %v2818 = vlaneseq
        %v2819 = vshrl.u32 %v2818, 7
        %v2820 = vsub.s32 %v2817, %v2819
        %v2821 = vrot.slane %v2807, %v2820
        %v2822 = vcombine.high %v2814, 0.0
        %v2823 = vcombine.high %v2821, 0.0
        %2825 = vrot.lane.b32.xlu0 %v2822, 4
        %v2826 = vpop.permute.xlu0 %2825
        %2829 = vrot.lane.b32.xlu0 %v2821, 8
        %v2830 = vpop.permute.xlu0 %2829
        %2833 = vrot.lane.b32.xlu0 %v2823, 12
        %v2834 = vpop.permute.xlu0 %2833
        %v2836 = vsel %vm191, %v2814, %v2826
        %v2837 = vsel %vm193, %v2836, %v2830
        %v2838 = vsel %vm195, %v2837, %v2834
        %2839 = vrot.lane.b32.xlu0 %v2501, 120
        %v2840 = vpop.permute.xlu0 %2839
        %v2843 = vunpack.c.l.s4 1983009808
        %v2844 = vunpack.c.0.s8 %v2843
        %v2845 = vlaneseq
        %v2846 = vshrl.u32 %v2845, 7
        %v2847 = vsub.s32 %v2844, %v2846
        %v2848 = vrot.slane %v2840, %v2847
        %v2849 = vcombine.high %v2848, 0.0
        %v2851 = vunpack.c.l.s4 1934713408
        %v2852 = vunpack.c.0.s8 %v2851
        %v2853 = vlaneseq
        %v2854 = vshrl.u32 %v2853, 7
        %v2855 = vsub.s32 %v2852, %v2854
        %v2856 = vrot.slane %v2848, %v2855
        %v2858 = vunpack.c.l.s4 1934713408
        %v2859 = vunpack.c.0.s8 %v2858
        %v2860 = vlaneseq
        %v2861 = vshrl.u32 %v2860, 7
        %v2862 = vsub.s32 %v2859, %v2861
        %v2863 = vrot.slane %v2849, %v2862
        %v2864 = vcombine.high %v2856, 0.0
        %v2865 = vcombine.high %v2863, 0.0
        %2867 = vrot.lane.b32.xlu0 %v2864, 4
        %v2868 = vpop.permute.xlu0 %2867
        %2871 = vrot.lane.b32.xlu0 %v2863, 8
        %v2872 = vpop.permute.xlu0 %2871
        %2875 = vrot.lane.b32.xlu0 %v2865, 12
        %v2876 = vpop.permute.xlu0 %2875
        %v2878 = vsel %vm191, %v2856, %v2868
        %v2879 = vsel %vm193, %v2878, %v2872
        %v2880 = vsel %vm195, %v2879, %v2876
        %2881 = vrot.lane.b32.xlu0 %v2381, 116
        %v2882 = vpop.permute.xlu0 %2881
        %v2885 = vunpack.c.l.s4 1983009808
        %v2886 = vunpack.c.0.s8 %v2885
        %v2887 = vlaneseq
        %v2888 = vshrl.u32 %v2887, 7
        %v2889 = vsub.s32 %v2886, %v2888
        %v2890 = vrot.slane %v2882, %v2889
        %v2891 = vcombine.high %v2890, 0.0
        %v2893 = vunpack.c.l.s4 1934713408
        %v2894 = vunpack.c.0.s8 %v2893
        %v2895 = vlaneseq
        %v2896 = vshrl.u32 %v2895, 7
        %v2897 = vsub.s32 %v2894, %v2896
        %v2898 = vrot.slane %v2890, %v2897
        %v2900 = vunpack.c.l.s4 1934713408
        %v2901 = vunpack.c.0.s8 %v2900
        %v2902 = vlaneseq
        %v2903 = vshrl.u32 %v2902, 7
        %v2904 = vsub.s32 %v2901, %v2903
        %v2905 = vrot.slane %v2891, %v2904
        %v2906 = vcombine.high %v2898, 0.0
        %v2907 = vcombine.high %v2905, 0.0
        %2909 = vrot.lane.b32.xlu0 %v2906, 4
        %v2910 = vpop.permute.xlu0 %2909
        %2913 = vrot.lane.b32.xlu0 %v2905, 8
        %v2914 = vpop.permute.xlu0 %2913
        %2917 = vrot.lane.b32.xlu0 %v2907, 12
        %v2918 = vpop.permute.xlu0 %2917
        %v2920 = vsel %vm191, %v2898, %v2910
        %v2921 = vsel %vm193, %v2920, %v2914
        %v2922 = vsel %vm195, %v2921, %v2918
        %2923 = vrot.lane.b32.xlu0 %v2421, 116
        %v2924 = vpop.permute.xlu0 %2923
        %v2927 = vunpack.c.l.s4 1983009808
        %v2928 = vunpack.c.0.s8 %v2927
        %v2929 = vlaneseq
        %v2930 = vshrl.u32 %v2929, 7
        %v2931 = vsub.s32 %v2928, %v2930
        %v2932 = vrot.slane %v2924, %v2931
        %v2933 = vcombine.high %v2932, 0.0
        %v2935 = vunpack.c.l.s4 1934713408
        %v2936 = vunpack.c.0.s8 %v2935
        %v2937 = vlaneseq
        %v2938 = vshrl.u32 %v2937, 7
        %v2939 = vsub.s32 %v2936, %v2938
        %v2940 = vrot.slane %v2932, %v2939
        %v2942 = vunpack.c.l.s4 1934713408
        %v2943 = vunpack.c.0.s8 %v2942
        %v2944 = vlaneseq
        %v2945 = vshrl.u32 %v2944, 7
        %v2946 = vsub.s32 %v2943, %v2945
        %v2947 = vrot.slane %v2933, %v2946
        %v2948 = vcombine.high %v2940, 0.0
        %v2949 = vcombine.high %v2947, 0.0
        %2951 = vrot.lane.b32.xlu0 %v2948, 4
        %v2952 = vpop.permute.xlu0 %2951
        %2955 = vrot.lane.b32.xlu0 %v2947, 8
        %v2956 = vpop.permute.xlu0 %2955
        %2959 = vrot.lane.b32.xlu0 %v2949, 12
        %v2960 = vpop.permute.xlu0 %2959
        %v2962 = vsel %vm191, %v2940, %v2952
        %v2963 = vsel %vm193, %v2962, %v2956
        %v2964 = vsel %vm195, %v2963, %v2960
        %2965 = vrot.lane.b32.xlu0 %v2461, 116
        %v2966 = vpop.permute.xlu0 %2965
        %v2969 = vunpack.c.l.s4 1983009808
        %v2970 = vunpack.c.0.s8 %v2969
        %v2971 = vlaneseq
        %v2972 = vshrl.u32 %v2971, 7
        %v2973 = vsub.s32 %v2970, %v2972
        %v2974 = vrot.slane %v2966, %v2973
        %v2975 = vcombine.high %v2974, 0.0
        %v2977 = vunpack.c.l.s4 1934713408
        %v2978 = vunpack.c.0.s8 %v2977
        %v2979 = vlaneseq
        %v2980 = vshrl.u32 %v2979, 7
        %v2981 = vsub.s32 %v2978, %v2980
        %v2982 = vrot.slane %v2974, %v2981
        %v2984 = vunpack.c.l.s4 1934713408
        %v2985 = vunpack.c.0.s8 %v2984
        %v2986 = vlaneseq
        %v2987 = vshrl.u32 %v2986, 7
        %v2988 = vsub.s32 %v2985, %v2987
        %v2989 = vrot.slane %v2975, %v2988
        %v2990 = vcombine.high %v2982, 0.0
        %v2991 = vcombine.high %v2989, 0.0
        %2993 = vrot.lane.b32.xlu0 %v2990, 4
        %v2994 = vpop.permute.xlu0 %2993
        %2997 = vrot.lane.b32.xlu0 %v2989, 8
        %v2998 = vpop.permute.xlu0 %2997
        %3001 = vrot.lane.b32.xlu0 %v2991, 12
        %v3002 = vpop.permute.xlu0 %3001
        %v3004 = vsel %vm191, %v2982, %v2994
        %v3005 = vsel %vm193, %v3004, %v2998
        %v3006 = vsel %vm195, %v3005, %v3002
        %3007 = vrot.lane.b32.xlu0 %v2501, 116
        %v3008 = vpop.permute.xlu0 %3007
        %v3011 = vunpack.c.l.s4 1983009808
        %v3012 = vunpack.c.0.s8 %v3011
        %v3013 = vlaneseq
        %v3014 = vshrl.u32 %v3013, 7
        %v3015 = vsub.s32 %v3012, %v3014
        %v3016 = vrot.slane %v3008, %v3015
        %v3017 = vcombine.high %v3016, 0.0
        %v3019 = vunpack.c.l.s4 1934713408
        %v3020 = vunpack.c.0.s8 %v3019
        %v3021 = vlaneseq
        %v3022 = vshrl.u32 %v3021, 7
        %v3023 = vsub.s32 %v3020, %v3022
        %v3024 = vrot.slane %v3016, %v3023
        %v3026 = vunpack.c.l.s4 1934713408
        %v3027 = vunpack.c.0.s8 %v3026
        %v3028 = vlaneseq
        %v3029 = vshrl.u32 %v3028, 7
        %v3030 = vsub.s32 %v3027, %v3029
        %v3031 = vrot.slane %v3017, %v3030
        %v3032 = vcombine.high %v3024, 0.0
        %v3033 = vcombine.high %v3031, 0.0
        %3035 = vrot.lane.b32.xlu0 %v3032, 4
        %v3036 = vpop.permute.xlu0 %3035
        %3039 = vrot.lane.b32.xlu0 %v3031, 8
        %v3040 = vpop.permute.xlu0 %3039
        %3043 = vrot.lane.b32.xlu0 %v3033, 12
        %v3044 = vpop.permute.xlu0 %3043
        %v3046 = vsel %vm191, %v3024, %v3036
        %v3047 = vsel %vm193, %v3046, %v3040
        %v3048 = vsel %vm195, %v3047, %v3044
        %3050 = vrot.lane.b32.xlu0 %v2460, 16
        %v3051 = vpop.permute.xlu0 %3050
        %3054 = vrot.lane.b32.xlu0 %v2500, 32
        %v3055 = vpop.permute.xlu0 %3054
        %3058 = vrot.lane.b32.xlu0 %v2540, 48
        %v3059 = vpop.permute.xlu0 %3058
        %3062 = vrot.lane.b32.xlu0 %v2583, 64
        %v3063 = vpop.permute.xlu0 %3062
        %3066 = vrot.lane.b32.xlu0 %v2626, 80
        %v3067 = vpop.permute.xlu0 %3066
        %3070 = vrot.lane.b32.xlu0 %v2669, 96
        %v3071 = vpop.permute.xlu0 %3070
        %3074 = vrot.lane.b32.xlu0 %v2712, 112
        %v3075 = vpop.permute.xlu0 %3074
        %3078 = vrot.lane.b32.xlu0 %v2796, 16
        %v3079 = vpop.permute.xlu0 %3078
        %3082 = vrot.lane.b32.xlu0 %v2838, 32
        %v3083 = vpop.permute.xlu0 %3082
        %3086 = vrot.lane.b32.xlu0 %v2880, 48
        %v3087 = vpop.permute.xlu0 %3086
        %3090 = vrot.lane.b32.xlu0 %v2922, 64
        %v3091 = vpop.permute.xlu0 %3090
        %3094 = vrot.lane.b32.xlu0 %v2964, 80
        %v3095 = vpop.permute.xlu0 %3094
        %3098 = vrot.lane.b32.xlu0 %v3006, 96
        %v3099 = vpop.permute.xlu0 %3098
        %3102 = vrot.lane.b32.xlu0 %v3048, 112
        %v3103 = vpop.permute.xlu0 %3102
        %v3105 = vsel %vm884, %v2420, %v3051
        %v3106 = vsel %vm886, %v3105, %v3055
        %v3107 = vsel %vm888, %v3106, %v3059
        %v3108 = vsel %vm890, %v3107, %v3063
        %v3109 = vsel %vm892, %v3108, %v3067
        %v3110 = vsel %vm894, %v3109, %v3071
        %v3111 = vsel %vm896, %v3110, %v3075
        %v3112 = vsel %vm884, %v2754, %v3079
        %v3113 = vsel %vm886, %v3112, %v3083
        %v3114 = vsel %vm888, %v3113, %v3087
        %v3115 = vsel %vm890, %v3114, %v3091
        %v3116 = vsel %vm892, %v3115, %v3095
        %v3117 = vsel %vm894, %v3116, %v3099
        %v3118 = vsel %vm896, %v3117, %v3103
        %v3121 = vrot.slane %v1635, 7
        %v3122 = vrot.slane %v1642, 7
        %v3127 = vrot.slane %v2373, 6
        %v3128 = vrot.slane %v2380, 6
        %v3133 = vrot.slane %v3111, 5
        %v3134 = vrot.slane %v3118, 5
        %vm3137 = vcmask 1040384
        %v3138 = vsel %vm3137, %v897, %v3121
        %v3139 = vsel %vm3137, %v904, %v3122
        %vm3140 = vcmask 1041408
        %v3141 = vsel %vm3140, %v3138, %v3127
        %v3142 = vsel %vm3140, %v3139, %v3128
        %vm3143 = vcmask 1042432
        %v3144 = vsel %vm3143, %v3141, %v3133
        %v3145 = vsel %vm3143, %v3142, %v3134
        %v3148 = vcombine.low %v3144, %v3145
        %3150 = vst [vmem:[%s152] sm:$0xff] %v3148
        %s3151 = sand.u32 %s68, 1
        %s3152 = scalar_lea.sflag [#allocation4], %s3151
        %s3153 = sand.u32 %s68, 1
        %s3154 = smul.addr %s3153, 8
        %s3155 = scalar_lea.vmem [#allocation5], %s3154
        // Predicated region
        $region29: #{tpu_custom_call.1} parent=23 // pred_check
          %p3156 = pneg %p78
        $region30: #{tpu_custom_call.1} parent=23 // pred_check_branch
          %3158 = sbr.rel (%p3156) target = $region32
        $region31: #{tpu_custom_call.1} parent=23 // pred_region
          %s3160 = ssub.s32 128, 128
          %3161 = vsyncadd %s3152, %s3160
          %s3162 = smul.addr %s23, 2
          %s3163 = smul.addr %s22, 2
          %s3164 = sadd.s32 %s3162, %s3163
          %s3165 = smul.addr %s3164, 64
          %s3166 = scalar_lea.hbm %s1, %s3165
          %s3168 = sshll.u32 %s3155, 4
          %s3169 = int_to_ptr.vmem [resolvable:$true] %s3168
          %3171 = dma.vmem_to_hbm [thread:$0]  %s3169, 128, %s3166, %s3152
        $region32: #{tpu_custom_call.1} parent=23 // pred_fallthru
          _
      $region24: #{tpu_custom_call.1} parent=5 // pred_fallthru
        _
      %p3172 = scmp.le.s32.totalorder 2, %s13
      // Predicated region
      $region33: #{tpu_custom_call.1} parent=5 // pred_check
        %p3173 = pneg %p3172
      $region34: #{tpu_custom_call.1} parent=5 // pred_check_branch
        %3175 = sbr.rel (%p3173) target = $region36
      $region35: #{tpu_custom_call.1} parent=5 // pred_region
        %s3176 = ssub.s32 %s13, 2
        // Predicated region
        $region37: #{tpu_custom_call.1} parent=35 // pred_check
          %p3177 = pneg %p84
        $region38: #{tpu_custom_call.1} parent=35 // pred_check_branch
          %3179 = sbr.rel (%p3177) target = $region40
        $region39: #{tpu_custom_call.1} parent=35 // pred_region
          %s3180 = sand.u32 %s69, 1
          %s3181 = scalar_lea.sflag [#allocation4], %s3180
          %s3182 = sand.u32 %s69, 1
          %s3183 = smul.addr %s3182, 8
          %s3184 = scalar_lea.vmem [#allocation5], %s3183
          %3185 = dma.done %s3181, 128
        $region40: #{tpu_custom_call.1} parent=35 // pred_fallthru
          _
      $region36: #{tpu_custom_call.1} parent=5 // pred_fallthru
        _
    $region6: #{tpu_custom_call.1} parent=1 // loop_footer
      %s17 = sadd.s32 1, %s13
    $region7: #{tpu_custom_call.1} parent=1 // loop_footer_branch
      %12 = sbr.rel target = $region3
    $region8: #{tpu_custom_call.1} parent=1 // loop_exit
      _
    %3186 = vsyncpa [#allocation3], 1
    %s3187 = scalar_lea.sflag [#allocation3], 1
    %3188 = vsyncpa %s3187, 1
    %3189 = vsyncpa [#allocation4], 1
    %s3190 = scalar_lea.sflag [#allocation4], 1
    %3191 = vsyncpa %s3190, 1

</llo_original>
